<compile_context>
chip_gen: v5e
topology: v5e:2x2
jax: 0.10.0
libtpu: 0.0.40
codegen_flags: <defaults>
</compile_context>

<pallas_src>
import numpy as np
import jax
import jax.numpy as jnp
from jax import lax
from jax.experimental import pallas as pl
from jax.experimental.pallas import tpu as pltpu


# ----------------------------------------------------------------------------- kernel
def blstm_kernel(gx_ref, whh_ref, bias_ref, len_ref, out_ref, h_ref, c_ref):
    """One grid step = (direction d, time-chunk tc); recurrence over the chunk inside.

    gx_ref : (TC, Bp, 4H) param_dtype  precomputed x @ W_ih^T for this direction/chunk
    whh_ref: (H, 4H)      param_dtype  recurrent weight (transposed)
    bias_ref:(1, 4H)      f32          b_ih + b_hh for this direction (fused add)
    len_ref: (Bp, 1)      int32        valid lengths (0 for padded batch rows)
    out_ref: (TC, Bp, H)  f32          per-direction hidden states, original time order
    h_ref/c_ref: (Bp, H)  f32          state carried across time chunks (VMEM scratch)
    """
    d = pl.program_id(0)                      # 0 = forward, 1 = backward
    tc = pl.program_id(1)                     # time-chunk index (in processing order)
    nc = pl.num_programs(1)
    TC, Bp, _ = gx_ref.shape
    H = whh_ref.shape[0]

    # Re-zero the recurrent state at the first chunk of EACH direction (on single-TC
    # chips the backward pass runs after the forward one on the same core).
    @pl.when(tc == 0)
    def _():
        h_ref[...] = jnp.zeros_like(h_ref)
        c_ref[...] = jnp.zeros_like(c_ref)

    lengths = len_ref[...]                            # (Bp, 1)  hoisted out of loop
    bias = bias_ref[...].astype(jnp.float32)          # (1, 4H)
    # Original-time index of local step 0 of this chunk (backward chunks are reversed).
    chunk_base = (d * (nc - 1) + (1 - 2 * d) * tc) * TC

    def step(t, carry):
        h, c = carry                                  # f32 (Bp, H)
        # local index inside the chunk (reversed for the backward direction)
        local_idx = d * (TC - 1) + (1 - 2 * d) * t
        time_idx = chunk_base + local_idx             # global original-time index

        gates = (gx_ref[local_idx].astype(jnp.float32) + bias
                 + jnp.dot(h.astype(whh_ref.dtype), whh_ref[...],
                           preferred_element_type=jnp.float32))      # (Bp, 4H) f32

        # PyTorch LSTM gate order: i, f, g, o
        i_g = jax.nn.sigmoid(gates[:, 0 * H:1 * H])
        f_g = jax.nn.sigmoid(gates[:, 1 * H:2 * H])
        g_g = jnp.tanh(gates[:, 2 * H:3 * H])
        o_g = jax.nn.sigmoid(gates[:, 3 * H:4 * H])

        c_new = f_g * c + i_g * g_g
        h_new = o_g * jnp.tanh(c_new)

        # pack_padded semantics: freeze state, emit zeros where time_idx >= length.
        mask = lengths > time_idx                     # (Bp, 1) bool
        h = jnp.where(mask, h_new, h)
        c = jnp.where(mask, c_new, c)
        out_ref[local_idx] = jnp.where(mask, h_new, 0.0)
        return (h, c)

    # Capped unroll: keeps LLO scheduling visibility with bounded code size / live ranges.
    h_fin, c_fin = lax.fori_loop(0, TC, step, (h_ref[...], c_ref[...]),
                                 unroll=min(8, TC))
    h_ref[...] = h_fin
    c_ref[...] = c_fin


# ----------------------------------------------------------------------------- sizing
def _vmem_budget_bytes():
    """Per-generation VMEM budget with headroom (v7x: ~52 MiB; v5e/v6e: ~100 MiB)."""
    try:
        cap = int(pltpu.get_tpu_info().vmem_capacity_bytes)
    except Exception:
        cap = 64 * 1024 * 1024                       # conservative fallback
    return max(min(cap - 12 * 1024 * 1024, 100 * 1024 * 1024), 32 * 1024 * 1024)


def _pick_time_chunk(T, Bp, H, gx_itemsize, vmem_budget, whh_bytes, whh_bufs):
    """Largest T chunk whose double-buffered gates/out tiles + weights fit the budget."""
    per_step = 2 * Bp * 4 * H * gx_itemsize + 2 * Bp * H * 4   # gx chunk + out chunk (x2 bufs)
    fixed = whh_bufs * whh_bytes + 2 * Bp * H * 4 + (2 << 20)  # weights + h/c scratch + slack
    avail = int(vmem_budget * 0.8) - fixed
    tc = avail // per_step if per_step > 0 else T
    return int(max(1, min(T, tc, 64)))


# ----------------------------------------------------------------------------- wrapper
def blstm_forward(emb_batch, lengths, w_ih, w_hh, b_ih, b_hh, *,
                  param_dtype=jnp.bfloat16, time_chunk=None):
    """emb_batch: (B, T, E) f32 (batch_first); lengths: (B,) int.
    PyTorch nn.LSTM(bidirectional=True) layout: w_ih (2, 4H, E), w_hh (2, 4H, H),
    b_ih / b_hh (2, 4H); dim 0 = (l0, l0_reverse); gate order i, f, g, o.
    Returns (B, T, 2H) = concat(forward_h, backward_h), zeros at padded positions."""
    B, T, E = emb_batch.shape
    H = w_hh.shape[2]
    G = 4 * H

    itemsize = jnp.dtype(param_dtype).itemsize
    sub = 8 * max(1, 4 // itemsize)          # 8 rows for f32, 16 for bf16 (packed sublanes)
    Bp = ((B + sub - 1) // sub) * sub

    vmem_budget = _vmem_budget_bytes()

    whh_bytes = H * G * itemsize
    # Single-buffer W_hh only when double-buffering it would not fit the budget
    # (production-size weights on v7x); keep default double-buffering otherwise so the
    # second direction's weight DMA hides behind the first direction's time loop.
    single_buffer_whh = (2 * whh_bytes > vmem_budget - (16 << 20))
    whh_bufs = 1 if single_buffer_whh else 2

    if time_chunk is None:
        time_chunk = _pick_time_chunk(T, Bp, H, itemsize, vmem_budget, whh_bytes, whh_bufs)
    TC = int(time_chunk)
    NC = -(-T // TC)                          # number of time chunks
    Tp = NC * TC                              # padded sequence length

    x = emb_batch.astype(param_dtype)
    x = jnp.pad(x, ((0, Bp - B), (0, Tp - T), (0, 0)))            # padded rows/steps -> masked
    len_col = jnp.zeros((Bp, 1), jnp.int32).at[:B, 0].set(lengths.astype(jnp.int32))

    wih_t = jnp.transpose(w_ih, (0, 2, 1)).astype(param_dtype)    # (2, E, 4H)
    whh_t = jnp.transpose(w_hh, (0, 2, 1)).astype(param_dtype)    # (2, H, 4H)
    bias = (b_ih + b_hh).astype(jnp.float32).reshape(2, 1, G)     # fused inside the kernel

    # Hoisted time-parallel input projection: one big MXU matmul instead of 2*T tiny
    # per-step ones; also folds the (B,T,E)->(T,B,E) layout change.  Stored in
    # param_dtype (bf16 on the fast path) to halve HBM/VMEM traffic; bias NOT added here.
    gx = jnp.einsum('bte,deg->dtbg', x, wih_t,
                    preferred_element_type=jnp.float32).astype(param_dtype)  # (2,Tp,Bp,4H)

    def gx_index(d, t):   # backward direction consumes chunks in reverse order
        return (d, d * (NC - 1) + (1 - 2 * d) * t, 0, 0)

    def whh_index(d, t):
        return (d, 0, 0)

    whh_kwargs = dict(pipeline_mode=pl.Buffered(1)) if single_buffer_whh else {}
    whh_spec = pl.BlockSpec((None, H, G), whh_index, **whh_kwargs)

    out = pl.pallas_call(
        blstm_kernel,
        out_shape=jax.ShapeDtypeStruct((2, Tp, Bp, H), jnp.float32),
        grid_spec=pltpu.PrefetchScalarGridSpec(
            num_scalar_prefetch=0,
            grid=(2, NC),                                         # (direction, time chunk)
            in_specs=[
                pl.BlockSpec((None, TC, Bp, G), gx_index),        # gates_x chunk
                whh_spec,                                         # W_hh^T
                pl.BlockSpec((None, 1, G), whh_index),            # fused bias
                pl.BlockSpec((Bp, 1), lambda d, t: (0, 0)),       # lengths
            ],
            out_specs=pl.BlockSpec((None, TC, Bp, H), gx_index),
            scratch_shapes=[pltpu.VMEM((Bp, H), jnp.float32),     # h carried across chunks
                            pltpu.VMEM((Bp, H), jnp.float32)],    # c carried across chunks
        ),
        compiler_params=pltpu.CompilerParams(
            dimension_semantics=("parallel", "arbitrary"),        # fwd/bwd -> 2 TCs on v7x
            vmem_limit_bytes=vmem_budget),
    )(gx, whh_t, bias, len_col)

    # (2, Tp, Bp, H) -> (B, T, 2H); forward direction occupies the first H columns.
    # TODO(synk): at production H (H % 128 == 0) fold this transpose into out_specs
    # (lane-dense (Bp, T, 2H) stores) instead of a post-kernel HBM pass.
    return jnp.transpose(out, (2, 1, 0, 3))[:B, :T].reshape(B, T, 2 * H)


# ----------------------------------------------------------------------------- pure-JAX reference
def blstm_reference(emb_batch, lengths, w_ih, w_hh, b_ih, b_hh):
    B, T, E = emb_batch.shape
    H = w_hh.shape[2]

    def run_dir(direction):
        w1 = w_ih[direction].T                                    # (E, 4H)
        w2 = w_hh[direction].T                                    # (H, 4H)
        b = (b_ih[direction] + b_hh[direction])[None, :]
        tids = jnp.arange(T) if direction == 0 else jnp.arange(T - 1, -1, -1)
        xs = jnp.transpose(emb_batch[:, tids, :], (1, 0, 2))      # (T, B, E) processing order

        def step(carry, inp):
            h, c = carry
            x_t, tid = inp
            gates = x_t @ w1 + h @ w2 + b
            i = jax.nn.sigmoid(gates[:, :H])
            f = jax.nn.sigmoid(gates[:, H:2 * H])
            g = jnp.tanh(gates[:, 2 * H:3 * H])
            o = jax.nn.sigmoid(gates[:, 3 * H:])
            c_new = f * c + i * g
            h_new = o * jnp.tanh(c_new)
            m = lengths[:, None] > tid
            return ((jnp.where(m, h_new, h), jnp.where(m, c_new, c)),
                    jnp.where(m, h_new, 0.0))

        init = (jnp.zeros((B, H), jnp.float32), jnp.zeros((B, H), jnp.float32))
        _, outs = lax.scan(step, init, (xs, tids))
        if direction == 1:
            outs = outs[::-1]
        return jnp.transpose(outs, (1, 0, 2))

    return jnp.concatenate([run_dir(0), run_dir(1)], axis=-1)


# ----------------------------------------------------------------------------- main
if __name__ == "__main__":
    # small shapes: batch=2, seq=8, embedding_dim=16, hidden=32 (module default 2048 scaled down)
    B, T, E, H = 2, 8, 16, 32

    key = jax.random.PRNGKey(0)
    k_x, k_wih, k_whh, k_bih, k_bhh = jax.random.split(key, 5)

    s = 1.0 / np.sqrt(H)
    w_ih = jax.random.uniform(k_wih, (2, 4 * H, E), jnp.float32, -s, s)
    w_hh = jax.random.uniform(k_whh, (2, 4 * H, H), jnp.float32, -s, s)
    b_ih = jax.random.uniform(k_bih, (2, 4 * H), jnp.float32, -s, s)
    b_hh = jax.random.uniform(k_bhh, (2, 4 * H), jnp.float32, -s, s)

    emb_batch = jax.random.normal(k_x, (B, T, E), jnp.float32)
    lengths = jnp.array([T, T - 3], dtype=jnp.int32)          # variable-length batch

    ref = jax.block_until_ready(blstm_reference(emb_batch, lengths, w_ih, w_hh, b_ih, b_hh))

    # f32 parameter path, single time chunk: tight check of recurrence / masking / layout.
    out_f32 = jax.block_until_ready(
        blstm_forward(emb_batch, lengths, w_ih, w_hh, b_ih, b_hh, param_dtype=jnp.float32))
    assert out_f32.shape == (B, T, 2 * H), out_f32.shape
    assert np.allclose(np.asarray(out_f32), np.asarray(ref), atol=1e-3, rtol=1e-3), \
        float(np.max(np.abs(np.asarray(out_f32) - np.asarray(ref))))

    # f32 path with forced time chunking (TC=3 -> 3 chunks, padded time): exercises the
    # chunked pipeline, the h/c scratch carry, reversed backward chunk order and the
    # per-direction re-zeroing at chunk 0.
    out_f32_ck = jax.block_until_ready(
        blstm_forward(emb_batch, lengths, w_ih, w_hh, b_ih, b_hh,
                      param_dtype=jnp.float32, time_chunk=3))
    assert out_f32_ck.shape == (B, T, 2 * H), out_f32_ck.shape
    assert np.allclose(np.asarray(out_f32_ck), np.asarray(ref), atol=1e-3, rtol=1e-3), \
        float(np.max(np.abs(np.asarray(out_f32_ck) - np.asarray(ref))))

    # bf16 weight/activation/gates_x path (the perf configuration); looser tolerance only
    # covers bf16 quantization of x / W_ih / W_hh / h / gates_x feeding the f32 MXU path.
    out_bf16 = jax.block_until_ready(
        blstm_forward(emb_batch, lengths, w_ih, w_hh, b_ih, b_hh, param_dtype=jnp.bfloat16))
    assert out_bf16.shape == (B, T, 2 * H), out_bf16.shape
    assert np.allclose(np.asarray(out_bf16), np.asarray(ref), atol=5e-2, rtol=5e-2), \
        float(np.max(np.abs(np.asarray(out_bf16) - np.asarray(ref))))

    # TODO(synk): pack_forward's sort-by-length restore and dropout(p=0.0) are no-ops;
    # packing is reproduced via per-timestep length masking (identical output values).
    print("KERNEL_OK")
</pallas_src>

<mosaic_0001>
module attributes {stable_mosaic.version = 11 : i64} {
  func.func @blstm_kernel(%arg0: i32, %arg1: i32, %arg2: memref<1x8x8x128xf32, #tpu.memory_space<vmem>>, %arg3: memref<1x32x128xf32, #tpu.memory_space<vmem>>, %arg4: memref<1x1x128xf32, #tpu.memory_space<vmem>>, %arg5: memref<8x1xi32, #tpu.memory_space<vmem>>, %arg6: memref<1x8x8x32xf32, #tpu.memory_space<vmem>>, %arg7: memref<8x32xf32, #tpu.memory_space<vmem>>, %arg8: memref<8x32xf32, #tpu.memory_space<vmem>>) attributes {dimension_semantics = [#tpu.dimension_semantics<parallel>, #tpu.dimension_semantics<arbitrary>], iteration_bounds = array<i64: 2, 1>, scalar_prefetch = 0 : i64, scratch_operands = 2 : i64, tpu.core_type = #tpu.core_type<tc>, window_params = [{transform_indices = @transform_0, window_bounds = array<i64: 1, 8, 8, 128>}, {transform_indices = @transform_1, window_bounds = array<i64: 1, 32, 128>}, {transform_indices = @transform_2, window_bounds = array<i64: 1, 1, 128>}, {pipeline_mode = #tpu.pipeline_mode<synchronous>, transform_indices = @transform_3, window_bounds = array<i64: 8, 1>}, {transform_indices = @transform_4, window_bounds = array<i64: 1, 8, 8, 32>}]} {
    %c0_i32 = arith.constant 0 : i32
    %0 = arith.cmpi eq, %arg1, %c0_i32 : i32
    %1 = arith.extui %0 : i1 to i32
    %c0_i32_0 = arith.constant 0 : i32
    %2 = arith.cmpi ne, %1, %c0_i32_0 : i32
    scf.if %2 {
      %cst_153 = arith.constant 0.000000e+00 : f32
      %464 = vector.broadcast %cst_153 : f32 to vector<8x32xf32>
      %c0_154 = arith.constant 0 : index
      %c0_155 = arith.constant 0 : index
      %465 = vector.load %arg7[%c0_154, %c0_155] : memref<8x32xf32, #tpu.memory_space<vmem>>, vector<8x32xf32>
      tpu.vector_store %arg7[%c0_154, %c0_155], %464 {strides = array<i32>} : memref<8x32xf32, #tpu.memory_space<vmem>>, vector<8x32xf32>,
      %cst_156 = arith.constant 0.000000e+00 : f32
      %466 = vector.broadcast %cst_156 : f32 to vector<8x32xf32>
      %c0_157 = arith.constant 0 : index
      %c0_158 = arith.constant 0 : index
      %467 = vector.load %arg8[%c0_157, %c0_158] : memref<8x32xf32, #tpu.memory_space<vmem>>, vector<8x32xf32>
      tpu.vector_store %arg8[%c0_157, %c0_158], %466 {strides = array<i32>} : memref<8x32xf32, #tpu.memory_space<vmem>>, vector<8x32xf32>,
    } else {
    }
    %c0 = arith.constant 0 : index
    %c0_1 = arith.constant 0 : index
    %3 = vector.load %arg5[%c0, %c0_1] : memref<8x1xi32, #tpu.memory_space<vmem>>, vector<8x1xi32>
    %c0_2 = arith.constant 0 : index
    %c0_3 = arith.constant 0 : index
    %c0_4 = arith.constant 0 : index
    %4 = vector.load %arg4[%c0_2, %c0_3, %c0_4] : memref<1x1x128xf32, #tpu.memory_space<vmem>>, vector<1x1x128xf32>
    %5 = vector.shape_cast %4 : vector<1x1x128xf32> to vector<1x128xf32>
    %c0_i32_5 = arith.constant 0 : i32
    %6 = arith.muli %arg0, %c0_i32_5 : i32
    %c2_i32 = arith.constant 2 : i32
    %7 = arith.muli %c2_i32, %arg0 : i32
    %c1_i32 = arith.constant 1 : i32
    %8 = arith.subi %c1_i32, %7 : i32
    %9 = arith.muli %8, %arg1 : i32
    %10 = arith.addi %6, %9 : i32
    %c8_i32 = arith.constant 8 : i32
    %11 = arith.muli %10, %c8_i32 : i32
    %c0_6 = arith.constant 0 : index
    %c0_7 = arith.constant 0 : index
    %12 = vector.load %arg7[%c0_6, %c0_7] : memref<8x32xf32, #tpu.memory_space<vmem>>, vector<8x32xf32>
    %c0_8 = arith.constant 0 : index
    %c0_9 = arith.constant 0 : index
    %13 = vector.load %arg8[%c0_8, %c0_9] : memref<8x32xf32, #tpu.memory_space<vmem>>, vector<8x32xf32>
    %c0_i32_10 = arith.constant 0 : i32
    %c7_i32 = arith.constant 7 : i32
    %14 = arith.muli %arg0, %c7_i32 : i32
    %c2_i32_11 = arith.constant 2 : i32
    %15 = arith.muli %c2_i32_11, %arg0 : i32
    %c1_i32_12 = arith.constant 1 : i32
    %16 = arith.subi %c1_i32_12, %15 : i32
    %17 = arith.muli %16, %c0_i32_10 : i32
    %18 = arith.addi %14, %17 : i32
    %19 = arith.addi %11, %18 : i32
    %c0_13 = arith.constant 0 : index
    %20 = arith.index_cast %18 : i32 to index
    %c0_14 = arith.constant 0 : index
    %c0_15 = arith.constant 0 : index
    %21 = vector.load %arg2[%c0_13, %20, %c0_14, %c0_15] : memref<1x8x8x128xf32, #tpu.memory_space<vmem>>, vector<1x1x8x128xf32>
    %22 = vector.shape_cast %21 : vector<1x1x8x128xf32> to vector<8x128xf32>
    %23 = vector.broadcast %5 : vector<1x128xf32> to vector<8x128xf32>
    %24 = arith.addf %22, %23 : vector<8x128xf32>
    %c0_16 = arith.constant 0 : index
    %c0_17 = arith.constant 0 : index
    %c0_18 = arith.constant 0 : index
    %25 = vector.load %arg3[%c0_16, %c0_17, %c0_18] : memref<1x32x128xf32, #tpu.memory_space<vmem>>, vector<1x32x128xf32>
    %26 = vector.shape_cast %25 : vector<1x32x128xf32> to vector<32x128xf32>
    %cst = arith.constant dense<0.000000e+00> : vector<8x128xf32>
    %27 = tpu.matmul %12, %26, %cst {dimension_numbers = #tpu.dot_dimension_numbers<[1], [0], [0], [1], [0, 0, 1, 1], [], []>} : vector<8x32xf32>, vector<32x128xf32>, vector<8x128xf32> -> vector<8x128xf32>
    %28 = arith.addf %24, %27 : vector<8x128xf32>
    %29 = vector.extract_strided_slice %28 {offsets = [0, 0], sizes = [8, 32], strides = [1, 1]} : vector<8x128xf32> to vector<8x32xf32>
    %30 = arith.negf %29 : vector<8x32xf32>
    %31 = math.exp %30 : vector<8x32xf32>
    %cst_19 = arith.constant 1.000000e+00 : f32
    %32 = vector.broadcast %cst_19 : f32 to vector<8x32xf32>
    %33 = arith.addf %32, %31 : vector<8x32xf32>
    %34 = arith.divf %32, %33 : vector<8x32xf32>
    %35 = vector.extract_strided_slice %28 {offsets = [0, 32], sizes = [8, 32], strides = [1, 1]} : vector<8x128xf32> to vector<8x32xf32>
    %36 = arith.negf %35 : vector<8x32xf32>
    %37 = math.exp %36 : vector<8x32xf32>
    %cst_20 = arith.constant 1.000000e+00 : f32
    %38 = vector.broadcast %cst_20 : f32 to vector<8x32xf32>
    %39 = arith.addf %38, %37 : vector<8x32xf32>
    %40 = arith.divf %38, %39 : vector<8x32xf32>
    %41 = vector.extract_strided_slice %28 {offsets = [0, 64], sizes = [8, 32], strides = [1, 1]} : vector<8x128xf32> to vector<8x32xf32>
    %42 = math.tanh %41 : vector<8x32xf32>
    %43 = vector.extract_strided_slice %28 {offsets = [0, 96], sizes = [8, 32], strides = [1, 1]} : vector<8x128xf32> to vector<8x32xf32>
    %44 = arith.negf %43 : vector<8x32xf32>
    %45 = math.exp %44 : vector<8x32xf32>
    %cst_21 = arith.constant 1.000000e+00 : f32
    %46 = vector.broadcast %cst_21 : f32 to vector<8x32xf32>
    %47 = arith.addf %46, %45 : vector<8x32xf32>
    %48 = arith.divf %46, %47 : vector<8x32xf32>
    %49 = arith.mulf %40, %13 : vector<8x32xf32>
    %50 = arith.mulf %34, %42 : vector<8x32xf32>
    %51 = arith.addf %49, %50 : vector<8x32xf32>
    %52 = math.tanh %51 : vector<8x32xf32>
    %53 = arith.mulf %48, %52 : vector<8x32xf32>
    %54 = vector.broadcast %19 : i32 to vector<8x1xi32>
    %55 = arith.cmpi sgt, %3, %54 : vector<8x1xi32>
    %56 = vector.shape_cast %55 : vector<8x1xi1> to vector<8x1xi1>
    %57 = vector.broadcast %56 : vector<8x1xi1> to vector<8x32xi1>
    %58 = arith.select %57, %53, %12 : vector<8x32xi1>, vector<8x32xf32>
    %59 = vector.shape_cast %55 : vector<8x1xi1> to vector<8x1xi1>
    %60 = vector.broadcast %59 : vector<8x1xi1> to vector<8x32xi1>
    %61 = arith.select %60, %51, %13 : vector<8x32xi1>, vector<8x32xf32>
    %cst_22 = arith.constant 0.000000e+00 : f32
    %62 = vector.shape_cast %55 : vector<8x1xi1> to vector<8x1xi1>
    %63 = vector.broadcast %62 : vector<8x1xi1> to vector<8x32xi1>
    %64 = vector.broadcast %cst_22 : f32 to vector<8x32xf32>
    %65 = arith.select %63, %53, %64 : vector<8x32xi1>, vector<8x32xf32>
    %c0_23 = arith.constant 0 : index
    %66 = arith.index_cast %18 : i32 to index
    %c0_24 = arith.constant 0 : index
    %c0_25 = arith.constant 0 : index
    %67 = vector.load %arg6[%c0_23, %66, %c0_24, %c0_25] : memref<1x8x8x32xf32, #tpu.memory_space<vmem>>, vector<1x1x8x32xf32>
    %68 = vector.shape_cast %67 : vector<1x1x8x32xf32> to vector<8x32xf32>
    %69 = vector.shape_cast %65 : vector<8x32xf32> to vector<1x1x8x32xf32>
    tpu.vector_store %arg6[%c0_23, %66, %c0_24, %c0_25], %69 {strides = array<i32>} : memref<1x8x8x32xf32, #tpu.memory_space<vmem>>, vector<1x1x8x32xf32>,
    %c1_i32_26 = arith.constant 1 : i32
    %c7_i32_27 = arith.constant 7 : i32
    %70 = arith.muli %arg0, %c7_i32_27 : i32
    %c2_i32_28 = arith.constant 2 : i32
    %71 = arith.muli %c2_i32_28, %arg0 : i32
    %c1_i32_29 = arith.constant 1 : i32
    %72 = arith.subi %c1_i32_29, %71 : i32
    %73 = arith.muli %72, %c1_i32_26 : i32
    %74 = arith.addi %70, %73 : i32
    %75 = arith.addi %11, %74 : i32
    %c0_30 = arith.constant 0 : index
    %76 = arith.index_cast %74 : i32 to index
    %c0_31 = arith.constant 0 : index
    %c0_32 = arith.constant 0 : index
    %77 = vector.load %arg2[%c0_30, %76, %c0_31, %c0_32] : memref<1x8x8x128xf32, #tpu.memory_space<vmem>>, vector<1x1x8x128xf32>
    %78 = vector.shape_cast %77 : vector<1x1x8x128xf32> to vector<8x128xf32>
    %79 = vector.broadcast %5 : vector<1x128xf32> to vector<8x128xf32>
    %80 = arith.addf %78, %79 : vector<8x128xf32>
    %c0_33 = arith.constant 0 : index
    %c0_34 = arith.constant 0 : index
    %c0_35 = arith.constant 0 : index
    %81 = vector.load %arg3[%c0_33, %c0_34, %c0_35] : memref<1x32x128xf32, #tpu.memory_space<vmem>>, vector<1x32x128xf32>
    %82 = vector.shape_cast %81 : vector<1x32x128xf32> to vector<32x128xf32>
    %cst_36 = arith.constant dense<0.000000e+00> : vector<8x128xf32>
    %83 = tpu.matmul %58, %82, %cst_36 {dimension_numbers = #tpu.dot_dimension_numbers<[1], [0], [0], [1], [0, 0, 1, 1], [], []>} : vector<8x32xf32>, vector<32x128xf32>, vector<8x128xf32> -> vector<8x128xf32>
    %84 = arith.addf %80, %83 : vector<8x128xf32>
    %85 = vector.extract_strided_slice %84 {offsets = [0, 0], sizes = [8, 32], strides = [1, 1]} : vector<8x128xf32> to vector<8x32xf32>
    %86 = arith.negf %85 : vector<8x32xf32>
    %87 = math.exp %86 : vector<8x32xf32>
    %cst_37 = arith.constant 1.000000e+00 : f32
    %88 = vector.broadcast %cst_37 : f32 to vector<8x32xf32>
    %89 = arith.addf %88, %87 : vector<8x32xf32>
    %90 = arith.divf %88, %89 : vector<8x32xf32>
    %91 = vector.extract_strided_slice %84 {offsets = [0, 32], sizes = [8, 32], strides = [1, 1]} : vector<8x128xf32> to vector<8x32xf32>
    %92 = arith.negf %91 : vector<8x32xf32>
    %93 = math.exp %92 : vector<8x32xf32>
    %cst_38 = arith.constant 1.000000e+00 : f32
    %94 = vector.broadcast %cst_38 : f32 to vector<8x32xf32>
    %95 = arith.addf %94, %93 : vector<8x32xf32>
    %96 = arith.divf %94, %95 : vector<8x32xf32>
    %97 = vector.extract_strided_slice %84 {offsets = [0, 64], sizes = [8, 32], strides = [1, 1]} : vector<8x128xf32> to vector<8x32xf32>
    %98 = math.tanh %97 : vector<8x32xf32>
    %99 = vector.extract_strided_slice %84 {offsets = [0, 96], sizes = [8, 32], strides = [1, 1]} : vector<8x128xf32> to vector<8x32xf32>
    %100 = arith.negf %99 : vector<8x32xf32>
    %101 = math.exp %100 : vector<8x32xf32>
    %cst_39 = arith.constant 1.000000e+00 : f32
    %102 = vector.broadcast %cst_39 : f32 to vector<8x32xf32>
    %103 = arith.addf %102, %101 : vector<8x32xf32>
    %104 = arith.divf %102, %103 : vector<8x32xf32>
    %105 = arith.mulf %96, %61 : vector<8x32xf32>
    %106 = arith.mulf %90, %98 : vector<8x32xf32>
    %107 = arith.addf %105, %106 : vector<8x32xf32>
    %108 = math.tanh %107 : vector<8x32xf32>
    %109 = arith.mulf %104, %108 : vector<8x32xf32>
    %110 = vector.broadcast %75 : i32 to vector<8x1xi32>
    %111 = arith.cmpi sgt, %3, %110 : vector<8x1xi32>
    %112 = vector.shape_cast %111 : vector<8x1xi1> to vector<8x1xi1>
    %113 = vector.broadcast %112 : vector<8x1xi1> to vector<8x32xi1>
    %114 = arith.select %113, %109, %58 : vector<8x32xi1>, vector<8x32xf32>
    %115 = vector.shape_cast %111 : vector<8x1xi1> to vector<8x1xi1>
    %116 = vector.broadcast %115 : vector<8x1xi1> to vector<8x32xi1>
    %117 = arith.select %116, %107, %61 : vector<8x32xi1>, vector<8x32xf32>
    %cst_40 = arith.constant 0.000000e+00 : f32
    %118 = vector.shape_cast %111 : vector<8x1xi1> to vector<8x1xi1>
    %119 = vector.broadcast %118 : vector<8x1xi1> to vector<8x32xi1>
    %120 = vector.broadcast %cst_40 : f32 to vector<8x32xf32>
    %121 = arith.select %119, %109, %120 : vector<8x32xi1>, vector<8x32xf32>
    %c0_41 = arith.constant 0 : index
    %122 = arith.index_cast %74 : i32 to index
    %c0_42 = arith.constant 0 : index
    %c0_43 = arith.constant 0 : index
    %123 = vector.load %arg6[%c0_41, %122, %c0_42, %c0_43] : memref<1x8x8x32xf32, #tpu.memory_space<vmem>>, vector<1x1x8x32xf32>
    %124 = vector.shape_cast %123 : vector<1x1x8x32xf32> to vector<8x32xf32>
    %125 = vector.shape_cast %121 : vector<8x32xf32> to vector<1x1x8x32xf32>
    tpu.vector_store %arg6[%c0_41, %122, %c0_42, %c0_43], %125 {strides = array<i32>} : memref<1x8x8x32xf32, #tpu.memory_space<vmem>>, vector<1x1x8x32xf32>,
    %c2_i32_44 = arith.constant 2 : i32
    %c7_i32_45 = arith.constant 7 : i32
    %126 = arith.muli %arg0, %c7_i32_45 : i32
    %c2_i32_46 = arith.constant 2 : i32
    %127 = arith.muli %c2_i32_46, %arg0 : i32
    %c1_i32_47 = arith.constant 1 : i32
    %128 = arith.subi %c1_i32_47, %127 : i32
    %129 = arith.muli %128, %c2_i32_44 : i32
    %130 = arith.addi %126, %129 : i32
    %131 = arith.addi %11, %130 : i32
    %c0_48 = arith.constant 0 : index
    %132 = arith.index_cast %130 : i32 to index
    %c0_49 = arith.constant 0 : index
    %c0_50 = arith.constant 0 : index
    %133 = vector.load %arg2[%c0_48, %132, %c0_49, %c0_50] : memref<1x8x8x128xf32, #tpu.memory_space<vmem>>, vector<1x1x8x128xf32>
    %134 = vector.shape_cast %133 : vector<1x1x8x128xf32> to vector<8x128xf32>
    %135 = vector.broadcast %5 : vector<1x128xf32> to vector<8x128xf32>
    %136 = arith.addf %134, %135 : vector<8x128xf32>
    %c0_51 = arith.constant 0 : index
    %c0_52 = arith.constant 0 : index
    %c0_53 = arith.constant 0 : index
    %137 = vector.load %arg3[%c0_51, %c0_52, %c0_53] : memref<1x32x128xf32, #tpu.memory_space<vmem>>, vector<1x32x128xf32>
    %138 = vector.shape_cast %137 : vector<1x32x128xf32> to vector<32x128xf32>
    %cst_54 = arith.constant dense<0.000000e+00> : vector<8x128xf32>
    %139 = tpu.matmul %114, %138, %cst_54 {dimension_numbers = #tpu.dot_dimension_numbers<[1], [0], [0], [1], [0, 0, 1, 1], [], []>} : vector<8x32xf32>, vector<32x128xf32>, vector<8x128xf32> -> vector<8x128xf32>
    %140 = arith.addf %136, %139 : vector<8x128xf32>
    %141 = vector.extract_strided_slice %140 {offsets = [0, 0], sizes = [8, 32], strides = [1, 1]} : vector<8x128xf32> to vector<8x32xf32>
    %142 = arith.negf %141 : vector<8x32xf32>
    %143 = math.exp %142 : vector<8x32xf32>
    %cst_55 = arith.constant 1.000000e+00 : f32
    %144 = vector.broadcast %cst_55 : f32 to vector<8x32xf32>
    %145 = arith.addf %144, %143 : vector<8x32xf32>
    %146 = arith.divf %144, %145 : vector<8x32xf32>
    %147 = vector.extract_strided_slice %140 {offsets = [0, 32], sizes = [8, 32], strides = [1, 1]} : vector<8x128xf32> to vector<8x32xf32>
    %148 = arith.negf %147 : vector<8x32xf32>
    %149 = math.exp %148 : vector<8x32xf32>
    %cst_56 = arith.constant 1.000000e+00 : f32
    %150 = vector.broadcast %cst_56 : f32 to vector<8x32xf32>
    %151 = arith.addf %150, %149 : vector<8x32xf32>
    %152 = arith.divf %150, %151 : vector<8x32xf32>
    %153 = vector.extract_strided_slice %140 {offsets = [0, 64], sizes = [8, 32], strides = [1, 1]} : vector<8x128xf32> to vector<8x32xf32>
    %154 = math.tanh %153 : vector<8x32xf32>
    %155 = vector.extract_strided_slice %140 {offsets = [0, 96], sizes = [8, 32], strides = [1, 1]} : vector<8x128xf32> to vector<8x32xf32>
    %156 = arith.negf %155 : vector<8x32xf32>
    %157 = math.exp %156 : vector<8x32xf32>
    %cst_57 = arith.constant 1.000000e+00 : f32
    %158 = vector.broadcast %cst_57 : f32 to vector<8x32xf32>
    %159 = arith.addf %158, %157 : vector<8x32xf32>
    %160 = arith.divf %158, %159 : vector<8x32xf32>
    %161 = arith.mulf %152, %117 : vector<8x32xf32>
    %162 = arith.mulf %146, %154 : vector<8x32xf32>
    %163 = arith.addf %161, %162 : vector<8x32xf32>
    %164 = math.tanh %163 : vector<8x32xf32>
    %165 = arith.mulf %160, %164 : vector<8x32xf32>
    %166 = vector.broadcast %131 : i32 to vector<8x1xi32>
    %167 = arith.cmpi sgt, %3, %166 : vector<8x1xi32>
    %168 = vector.shape_cast %167 : vector<8x1xi1> to vector<8x1xi1>
    %169 = vector.broadcast %168 : vector<8x1xi1> to vector<8x32xi1>
    %170 = arith.select %169, %165, %114 : vector<8x32xi1>, vector<8x32xf32>
    %171 = vector.shape_cast %167 : vector<8x1xi1> to vector<8x1xi1>
    %172 = vector.broadcast %171 : vector<8x1xi1> to vector<8x32xi1>
    %173 = arith.select %172, %163, %117 : vector<8x32xi1>, vector<8x32xf32>
    %cst_58 = arith.constant 0.000000e+00 : f32
    %174 = vector.shape_cast %167 : vector<8x1xi1> to vector<8x1xi1>
    %175 = vector.broadcast %174 : vector<8x1xi1> to vector<8x32xi1>
    %176 = vector.broadcast %cst_58 : f32 to vector<8x32xf32>
    %177 = arith.select %175, %165, %176 : vector<8x32xi1>, vector<8x32xf32>
    %c0_59 = arith.constant 0 : index
    %178 = arith.index_cast %130 : i32 to index
    %c0_60 = arith.constant 0 : index
    %c0_61 = arith.constant 0 : index
    %179 = vector.load %arg6[%c0_59, %178, %c0_60, %c0_61] : memref<1x8x8x32xf32, #tpu.memory_space<vmem>>, vector<1x1x8x32xf32>
    %180 = vector.shape_cast %179 : vector<1x1x8x32xf32> to vector<8x32xf32>
    %181 = vector.shape_cast %177 : vector<8x32xf32> to vector<1x1x8x32xf32>
    tpu.vector_store %arg6[%c0_59, %178, %c0_60, %c0_61], %181 {strides = array<i32>} : memref<1x8x8x32xf32, #tpu.memory_space<vmem>>, vector<1x1x8x32xf32>,
    %c3_i32 = arith.constant 3 : i32
    %c7_i32_62 = arith.constant 7 : i32
    %182 = arith.muli %arg0, %c7_i32_62 : i32
    %c2_i32_63 = arith.constant 2 : i32
    %183 = arith.muli %c2_i32_63, %arg0 : i32
    %c1_i32_64 = arith.constant 1 : i32
    %184 = arith.subi %c1_i32_64, %183 : i32
    %185 = arith.muli %184, %c3_i32 : i32
    %186 = arith.addi %182, %185 : i32
    %187 = arith.addi %11, %186 : i32
    %c0_65 = arith.constant 0 : index
    %188 = arith.index_cast %186 : i32 to index
    %c0_66 = arith.constant 0 : index
    %c0_67 = arith.constant 0 : index
    %189 = vector.load %arg2[%c0_65, %188, %c0_66, %c0_67] : memref<1x8x8x128xf32, #tpu.memory_space<vmem>>, vector<1x1x8x128xf32>
    %190 = vector.shape_cast %189 : vector<1x1x8x128xf32> to vector<8x128xf32>
    %191 = vector.broadcast %5 : vector<1x128xf32> to vector<8x128xf32>
    %192 = arith.addf %190, %191 : vector<8x128xf32>
    %c0_68 = arith.constant 0 : index
    %c0_69 = arith.constant 0 : index
    %c0_70 = arith.constant 0 : index
    %193 = vector.load %arg3[%c0_68, %c0_69, %c0_70] : memref<1x32x128xf32, #tpu.memory_space<vmem>>, vector<1x32x128xf32>
    %194 = vector.shape_cast %193 : vector<1x32x128xf32> to vector<32x128xf32>
    %cst_71 = arith.constant dense<0.000000e+00> : vector<8x128xf32>
    %195 = tpu.matmul %170, %194, %cst_71 {dimension_numbers = #tpu.dot_dimension_numbers<[1], [0], [0], [1], [0, 0, 1, 1], [], []>} : vector<8x32xf32>, vector<32x128xf32>, vector<8x128xf32> -> vector<8x128xf32>
    %196 = arith.addf %192, %195 : vector<8x128xf32>
    %197 = vector.extract_strided_slice %196 {offsets = [0, 0], sizes = [8, 32], strides = [1, 1]} : vector<8x128xf32> to vector<8x32xf32>
    %198 = arith.negf %197 : vector<8x32xf32>
    %199 = math.exp %198 : vector<8x32xf32>
    %cst_72 = arith.constant 1.000000e+00 : f32
    %200 = vector.broadcast %cst_72 : f32 to vector<8x32xf32>
    %201 = arith.addf %200, %199 : vector<8x32xf32>
    %202 = arith.divf %200, %201 : vector<8x32xf32>
    %203 = vector.extract_strided_slice %196 {offsets = [0, 32], sizes = [8, 32], strides = [1, 1]} : vector<8x128xf32> to vector<8x32xf32>
    %204 = arith.negf %203 : vector<8x32xf32>
    %205 = math.exp %204 : vector<8x32xf32>
    %cst_73 = arith.constant 1.000000e+00 : f32
    %206 = vector.broadcast %cst_73 : f32 to vector<8x32xf32>
    %207 = arith.addf %206, %205 : vector<8x32xf32>
    %208 = arith.divf %206, %207 : vector<8x32xf32>
    %209 = vector.extract_strided_slice %196 {offsets = [0, 64], sizes = [8, 32], strides = [1, 1]} : vector<8x128xf32> to vector<8x32xf32>
    %210 = math.tanh %209 : vector<8x32xf32>
    %211 = vector.extract_strided_slice %196 {offsets = [0, 96], sizes = [8, 32], strides = [1, 1]} : vector<8x128xf32> to vector<8x32xf32>
    %212 = arith.negf %211 : vector<8x32xf32>
    %213 = math.exp %212 : vector<8x32xf32>
    %cst_74 = arith.constant 1.000000e+00 : f32
    %214 = vector.broadcast %cst_74 : f32 to vector<8x32xf32>
    %215 = arith.addf %214, %213 : vector<8x32xf32>
    %216 = arith.divf %214, %215 : vector<8x32xf32>
    %217 = arith.mulf %208, %173 : vector<8x32xf32>
    %218 = arith.mulf %202, %210 : vector<8x32xf32>
    %219 = arith.addf %217, %218 : vector<8x32xf32>
    %220 = math.tanh %219 : vector<8x32xf32>
    %221 = arith.mulf %216, %220 : vector<8x32xf32>
    %222 = vector.broadcast %187 : i32 to vector<8x1xi32>
    %223 = arith.cmpi sgt, %3, %222 : vector<8x1xi32>
    %224 = vector.shape_cast %223 : vector<8x1xi1> to vector<8x1xi1>
    %225 = vector.broadcast %224 : vector<8x1xi1> to vector<8x32xi1>
    %226 = arith.select %225, %221, %170 : vector<8x32xi1>, vector<8x32xf32>
    %227 = vector.shape_cast %223 : vector<8x1xi1> to vector<8x1xi1>
    %228 = vector.broadcast %227 : vector<8x1xi1> to vector<8x32xi1>
    %229 = arith.select %228, %219, %173 : vector<8x32xi1>, vector<8x32xf32>
    %cst_75 = arith.constant 0.000000e+00 : f32
    %230 = vector.shape_cast %223 : vector<8x1xi1> to vector<8x1xi1>
    %231 = vector.broadcast %230 : vector<8x1xi1> to vector<8x32xi1>
    %232 = vector.broadcast %cst_75 : f32 to vector<8x32xf32>
    %233 = arith.select %231, %221, %232 : vector<8x32xi1>, vector<8x32xf32>
    %c0_76 = arith.constant 0 : index
    %234 = arith.index_cast %186 : i32 to index
    %c0_77 = arith.constant 0 : index
    %c0_78 = arith.constant 0 : index
    %235 = vector.load %arg6[%c0_76, %234, %c0_77, %c0_78] : memref<1x8x8x32xf32, #tpu.memory_space<vmem>>, vector<1x1x8x32xf32>
    %236 = vector.shape_cast %235 : vector<1x1x8x32xf32> to vector<8x32xf32>
    %237 = vector.shape_cast %233 : vector<8x32xf32> to vector<1x1x8x32xf32>
    tpu.vector_store %arg6[%c0_76, %234, %c0_77, %c0_78], %237 {strides = array<i32>} : memref<1x8x8x32xf32, #tpu.memory_space<vmem>>, vector<1x1x8x32xf32>,
    %c4_i32 = arith.constant 4 : i32
    %c7_i32_79 = arith.constant 7 : i32
    %238 = arith.muli %arg0, %c7_i32_79 : i32
    %c2_i32_80 = arith.constant 2 : i32
    %239 = arith.muli %c2_i32_80, %arg0 : i32
    %c1_i32_81 = arith.constant 1 : i32
    %240 = arith.subi %c1_i32_81, %239 : i32
    %241 = arith.muli %240, %c4_i32 : i32
    %242 = arith.addi %238, %241 : i32
    %243 = arith.addi %11, %242 : i32
    %c0_82 = arith.constant 0 : index
    %244 = arith.index_cast %242 : i32 to index
    %c0_83 = arith.constant 0 : index
    %c0_84 = arith.constant 0 : index
    %245 = vector.load %arg2[%c0_82, %244, %c0_83, %c0_84] : memref<1x8x8x128xf32, #tpu.memory_space<vmem>>, vector<1x1x8x128xf32>
    %246 = vector.shape_cast %245 : vector<1x1x8x128xf32> to vector<8x128xf32>
    %247 = vector.broadcast %5 : vector<1x128xf32> to vector<8x128xf32>
    %248 = arith.addf %246, %247 : vector<8x128xf32>
    %c0_85 = arith.constant 0 : index
    %c0_86 = arith.constant 0 : index
    %c0_87 = arith.constant 0 : index
    %249 = vector.load %arg3[%c0_85, %c0_86, %c0_87] : memref<1x32x128xf32, #tpu.memory_space<vmem>>, vector<1x32x128xf32>
    %250 = vector.shape_cast %249 : vector<1x32x128xf32> to vector<32x128xf32>
    %cst_88 = arith.constant dense<0.000000e+00> : vector<8x128xf32>
    %251 = tpu.matmul %226, %250, %cst_88 {dimension_numbers = #tpu.dot_dimension_numbers<[1], [0], [0], [1], [0, 0, 1, 1], [], []>} : vector<8x32xf32>, vector<32x128xf32>, vector<8x128xf32> -> vector<8x128xf32>
    %252 = arith.addf %248, %251 : vector<8x128xf32>
    %253 = vector.extract_strided_slice %252 {offsets = [0, 0], sizes = [8, 32], strides = [1, 1]} : vector<8x128xf32> to vector<8x32xf32>
    %254 = arith.negf %253 : vector<8x32xf32>
    %255 = math.exp %254 : vector<8x32xf32>
    %cst_89 = arith.constant 1.000000e+00 : f32
    %256 = vector.broadcast %cst_89 : f32 to vector<8x32xf32>
    %257 = arith.addf %256, %255 : vector<8x32xf32>
    %258 = arith.divf %256, %257 : vector<8x32xf32>
    %259 = vector.extract_strided_slice %252 {offsets = [0, 32], sizes = [8, 32], strides = [1, 1]} : vector<8x128xf32> to vector<8x32xf32>
    %260 = arith.negf %259 : vector<8x32xf32>
    %261 = math.exp %260 : vector<8x32xf32>
    %cst_90 = arith.constant 1.000000e+00 : f32
    %262 = vector.broadcast %cst_90 : f32 to vector<8x32xf32>
    %263 = arith.addf %262, %261 : vector<8x32xf32>
    %264 = arith.divf %262, %263 : vector<8x32xf32>
    %265 = vector.extract_strided_slice %252 {offsets = [0, 64], sizes = [8, 32], strides = [1, 1]} : vector<8x128xf32> to vector<8x32xf32>
    %266 = math.tanh %265 : vector<8x32xf32>
    %267 = vector.extract_strided_slice %252 {offsets = [0, 96], sizes = [8, 32], strides = [1, 1]} : vector<8x128xf32> to vector<8x32xf32>
    %268 = arith.negf %267 : vector<8x32xf32>
    %269 = math.exp %268 : vector<8x32xf32>
    %cst_91 = arith.constant 1.000000e+00 : f32
    %270 = vector.broadcast %cst_91 : f32 to vector<8x32xf32>
    %271 = arith.addf %270, %269 : vector<8x32xf32>
    %272 = arith.divf %270, %271 : vector<8x32xf32>
    %273 = arith.mulf %264, %229 : vector<8x32xf32>
    %274 = arith.mulf %258, %266 : vector<8x32xf32>
    %275 = arith.addf %273, %274 : vector<8x32xf32>
    %276 = math.tanh %275 : vector<8x32xf32>
    %277 = arith.mulf %272, %276 : vector<8x32xf32>
    %278 = vector.broadcast %243 : i32 to vector<8x1xi32>
    %279 = arith.cmpi sgt, %3, %278 : vector<8x1xi32>
    %280 = vector.shape_cast %279 : vector<8x1xi1> to vector<8x1xi1>
    %281 = vector.broadcast %280 : vector<8x1xi1> to vector<8x32xi1>
    %282 = arith.select %281, %277, %226 : vector<8x32xi1>, vector<8x32xf32>
    %283 = vector.shape_cast %279 : vector<8x1xi1> to vector<8x1xi1>
    %284 = vector.broadcast %283 : vector<8x1xi1> to vector<8x32xi1>
    %285 = arith.select %284, %275, %229 : vector<8x32xi1>, vector<8x32xf32>
    %cst_92 = arith.constant 0.000000e+00 : f32
    %286 = vector.shape_cast %279 : vector<8x1xi1> to vector<8x1xi1>
    %287 = vector.broadcast %286 : vector<8x1xi1> to vector<8x32xi1>
    %288 = vector.broadcast %cst_92 : f32 to vector<8x32xf32>
    %289 = arith.select %287, %277, %288 : vector<8x32xi1>, vector<8x32xf32>
    %c0_93 = arith.constant 0 : index
    %290 = arith.index_cast %242 : i32 to index
    %c0_94 = arith.constant 0 : index
    %c0_95 = arith.constant 0 : index
    %291 = vector.load %arg6[%c0_93, %290, %c0_94, %c0_95] : memref<1x8x8x32xf32, #tpu.memory_space<vmem>>, vector<1x1x8x32xf32>
    %292 = vector.shape_cast %291 : vector<1x1x8x32xf32> to vector<8x32xf32>
    %293 = vector.shape_cast %289 : vector<8x32xf32> to vector<1x1x8x32xf32>
    tpu.vector_store %arg6[%c0_93, %290, %c0_94, %c0_95], %293 {strides = array<i32>} : memref<1x8x8x32xf32, #tpu.memory_space<vmem>>, vector<1x1x8x32xf32>,
    %c5_i32 = arith.constant 5 : i32
    %c7_i32_96 = arith.constant 7 : i32
    %294 = arith.muli %arg0, %c7_i32_96 : i32
    %c2_i32_97 = arith.constant 2 : i32
    %295 = arith.muli %c2_i32_97, %arg0 : i32
    %c1_i32_98 = arith.constant 1 : i32
    %296 = arith.subi %c1_i32_98, %295 : i32
    %297 = arith.muli %296, %c5_i32 : i32
    %298 = arith.addi %294, %297 : i32
    %299 = arith.addi %11, %298 : i32
    %c0_99 = arith.constant 0 : index
    %300 = arith.index_cast %298 : i32 to index
    %c0_100 = arith.constant 0 : index
    %c0_101 = arith.constant 0 : index
    %301 = vector.load %arg2[%c0_99, %300, %c0_100, %c0_101] : memref<1x8x8x128xf32, #tpu.memory_space<vmem>>, vector<1x1x8x128xf32>
    %302 = vector.shape_cast %301 : vector<1x1x8x128xf32> to vector<8x128xf32>
    %303 = vector.broadcast %5 : vector<1x128xf32> to vector<8x128xf32>
    %304 = arith.addf %302, %303 : vector<8x128xf32>
    %c0_102 = arith.constant 0 : index
    %c0_103 = arith.constant 0 : index
    %c0_104 = arith.constant 0 : index
    %305 = vector.load %arg3[%c0_102, %c0_103, %c0_104] : memref<1x32x128xf32, #tpu.memory_space<vmem>>, vector<1x32x128xf32>
    %306 = vector.shape_cast %305 : vector<1x32x128xf32> to vector<32x128xf32>
    %cst_105 = arith.constant dense<0.000000e+00> : vector<8x128xf32>
    %307 = tpu.matmul %282, %306, %cst_105 {dimension_numbers = #tpu.dot_dimension_numbers<[1], [0], [0], [1], [0, 0, 1, 1], [], []>} : vector<8x32xf32>, vector<32x128xf32>, vector<8x128xf32> -> vector<8x128xf32>
    %308 = arith.addf %304, %307 : vector<8x128xf32>
    %309 = vector.extract_strided_slice %308 {offsets = [0, 0], sizes = [8, 32], strides = [1, 1]} : vector<8x128xf32> to vector<8x32xf32>
    %310 = arith.negf %309 : vector<8x32xf32>
    %311 = math.exp %310 : vector<8x32xf32>
    %cst_106 = arith.constant 1.000000e+00 : f32
    %312 = vector.broadcast %cst_106 : f32 to vector<8x32xf32>
    %313 = arith.addf %312, %311 : vector<8x32xf32>
    %314 = arith.divf %312, %313 : vector<8x32xf32>
    %315 = vector.extract_strided_slice %308 {offsets = [0, 32], sizes = [8, 32], strides = [1, 1]} : vector<8x128xf32> to vector<8x32xf32>
    %316 = arith.negf %315 : vector<8x32xf32>
    %317 = math.exp %316 : vector<8x32xf32>
    %cst_107 = arith.constant 1.000000e+00 : f32
    %318 = vector.broadcast %cst_107 : f32 to vector<8x32xf32>
    %319 = arith.addf %318, %317 : vector<8x32xf32>
    %320 = arith.divf %318, %319 : vector<8x32xf32>
    %321 = vector.extract_strided_slice %308 {offsets = [0, 64], sizes = [8, 32], strides = [1, 1]} : vector<8x128xf32> to vector<8x32xf32>
    %322 = math.tanh %321 : vector<8x32xf32>
    %323 = vector.extract_strided_slice %308 {offsets = [0, 96], sizes = [8, 32], strides = [1, 1]} : vector<8x128xf32> to vector<8x32xf32>
    %324 = arith.negf %323 : vector<8x32xf32>
    %325 = math.exp %324 : vector<8x32xf32>
    %cst_108 = arith.constant 1.000000e+00 : f32
    %326 = vector.broadcast %cst_108 : f32 to vector<8x32xf32>
    %327 = arith.addf %326, %325 : vector<8x32xf32>
    %328 = arith.divf %326, %327 : vector<8x32xf32>
    %329 = arith.mulf %320, %285 : vector<8x32xf32>
    %330 = arith.mulf %314, %322 : vector<8x32xf32>
    %331 = arith.addf %329, %330 : vector<8x32xf32>
    %332 = math.tanh %331 : vector<8x32xf32>
    %333 = arith.mulf %328, %332 : vector<8x32xf32>
    %334 = vector.broadcast %299 : i32 to vector<8x1xi32>
    %335 = arith.cmpi sgt, %3, %334 : vector<8x1xi32>
    %336 = vector.shape_cast %335 : vector<8x1xi1> to vector<8x1xi1>
    %337 = vector.broadcast %336 : vector<8x1xi1> to vector<8x32xi1>
    %338 = arith.select %337, %333, %282 : vector<8x32xi1>, vector<8x32xf32>
    %339 = vector.shape_cast %335 : vector<8x1xi1> to vector<8x1xi1>
    %340 = vector.broadcast %339 : vector<8x1xi1> to vector<8x32xi1>
    %341 = arith.select %340, %331, %285 : vector<8x32xi1>, vector<8x32xf32>
    %cst_109 = arith.constant 0.000000e+00 : f32
    %342 = vector.shape_cast %335 : vector<8x1xi1> to vector<8x1xi1>
    %343 = vector.broadcast %342 : vector<8x1xi1> to vector<8x32xi1>
    %344 = vector.broadcast %cst_109 : f32 to vector<8x32xf32>
    %345 = arith.select %343, %333, %344 : vector<8x32xi1>, vector<8x32xf32>
    %c0_110 = arith.constant 0 : index
    %346 = arith.index_cast %298 : i32 to index
    %c0_111 = arith.constant 0 : index
    %c0_112 = arith.constant 0 : index
    %347 = vector.load %arg6[%c0_110, %346, %c0_111, %c0_112] : memref<1x8x8x32xf32, #tpu.memory_space<vmem>>, vector<1x1x8x32xf32>
    %348 = vector.shape_cast %347 : vector<1x1x8x32xf32> to vector<8x32xf32>
    %349 = vector.shape_cast %345 : vector<8x32xf32> to vector<1x1x8x32xf32>
    tpu.vector_store %arg6[%c0_110, %346, %c0_111, %c0_112], %349 {strides = array<i32>} : memref<1x8x8x32xf32, #tpu.memory_space<vmem>>, vector<1x1x8x32xf32>,
    %c6_i32 = arith.constant 6 : i32
    %c7_i32_113 = arith.constant 7 : i32
    %350 = arith.muli %arg0, %c7_i32_113 : i32
    %c2_i32_114 = arith.constant 2 : i32
    %351 = arith.muli %c2_i32_114, %arg0 : i32
    %c1_i32_115 = arith.constant 1 : i32
    %352 = arith.subi %c1_i32_115, %351 : i32
    %353 = arith.muli %352, %c6_i32 : i32
    %354 = arith.addi %350, %353 : i32
    %355 = arith.addi %11, %354 : i32
    %c0_116 = arith.constant 0 : index
    %356 = arith.index_cast %354 : i32 to index
    %c0_117 = arith.constant 0 : index
    %c0_118 = arith.constant 0 : index
    %357 = vector.load %arg2[%c0_116, %356, %c0_117, %c0_118] : memref<1x8x8x128xf32, #tpu.memory_space<vmem>>, vector<1x1x8x128xf32>
    %358 = vector.shape_cast %357 : vector<1x1x8x128xf32> to vector<8x128xf32>
    %359 = vector.broadcast %5 : vector<1x128xf32> to vector<8x128xf32>
    %360 = arith.addf %358, %359 : vector<8x128xf32>
    %c0_119 = arith.constant 0 : index
    %c0_120 = arith.constant 0 : index
    %c0_121 = arith.constant 0 : index
    %361 = vector.load %arg3[%c0_119, %c0_120, %c0_121] : memref<1x32x128xf32, #tpu.memory_space<vmem>>, vector<1x32x128xf32>
    %362 = vector.shape_cast %361 : vector<1x32x128xf32> to vector<32x128xf32>
    %cst_122 = arith.constant dense<0.000000e+00> : vector<8x128xf32>
    %363 = tpu.matmul %338, %362, %cst_122 {dimension_numbers = #tpu.dot_dimension_numbers<[1], [0], [0], [1], [0, 0, 1, 1], [], []>} : vector<8x32xf32>, vector<32x128xf32>, vector<8x128xf32> -> vector<8x128xf32>
    %364 = arith.addf %360, %363 : vector<8x128xf32>
    %365 = vector.extract_strided_slice %364 {offsets = [0, 0], sizes = [8, 32], strides = [1, 1]} : vector<8x128xf32> to vector<8x32xf32>
    %366 = arith.negf %365 : vector<8x32xf32>
    %367 = math.exp %366 : vector<8x32xf32>
    %cst_123 = arith.constant 1.000000e+00 : f32
    %368 = vector.broadcast %cst_123 : f32 to vector<8x32xf32>
    %369 = arith.addf %368, %367 : vector<8x32xf32>
    %370 = arith.divf %368, %369 : vector<8x32xf32>
    %371 = vector.extract_strided_slice %364 {offsets = [0, 32], sizes = [8, 32], strides = [1, 1]} : vector<8x128xf32> to vector<8x32xf32>
    %372 = arith.negf %371 : vector<8x32xf32>
    %373 = math.exp %372 : vector<8x32xf32>
    %cst_124 = arith.constant 1.000000e+00 : f32
    %374 = vector.broadcast %cst_124 : f32 to vector<8x32xf32>
    %375 = arith.addf %374, %373 : vector<8x32xf32>
    %376 = arith.divf %374, %375 : vector<8x32xf32>
    %377 = vector.extract_strided_slice %364 {offsets = [0, 64], sizes = [8, 32], strides = [1, 1]} : vector<8x128xf32> to vector<8x32xf32>
    %378 = math.tanh %377 : vector<8x32xf32>
    %379 = vector.extract_strided_slice %364 {offsets = [0, 96], sizes = [8, 32], strides = [1, 1]} : vector<8x128xf32> to vector<8x32xf32>
    %380 = arith.negf %379 : vector<8x32xf32>
    %381 = math.exp %380 : vector<8x32xf32>
    %cst_125 = arith.constant 1.000000e+00 : f32
    %382 = vector.broadcast %cst_125 : f32 to vector<8x32xf32>
    %383 = arith.addf %382, %381 : vector<8x32xf32>
    %384 = arith.divf %382, %383 : vector<8x32xf32>
    %385 = arith.mulf %376, %341 : vector<8x32xf32>
    %386 = arith.mulf %370, %378 : vector<8x32xf32>
    %387 = arith.addf %385, %386 : vector<8x32xf32>
    %388 = math.tanh %387 : vector<8x32xf32>
    %389 = arith.mulf %384, %388 : vector<8x32xf32>
    %390 = vector.broadcast %355 : i32 to vector<8x1xi32>
    %391 = arith.cmpi sgt, %3, %390 : vector<8x1xi32>
    %392 = vector.shape_cast %391 : vector<8x1xi1> to vector<8x1xi1>
    %393 = vector.broadcast %392 : vector<8x1xi1> to vector<8x32xi1>
    %394 = arith.select %393, %389, %338 : vector<8x32xi1>, vector<8x32xf32>
    %395 = vector.shape_cast %391 : vector<8x1xi1> to vector<8x1xi1>
    %396 = vector.broadcast %395 : vector<8x1xi1> to vector<8x32xi1>
    %397 = arith.select %396, %387, %341 : vector<8x32xi1>, vector<8x32xf32>
    %cst_126 = arith.constant 0.000000e+00 : f32
    %398 = vector.shape_cast %391 : vector<8x1xi1> to vector<8x1xi1>
    %399 = vector.broadcast %398 : vector<8x1xi1> to vector<8x32xi1>
    %400 = vector.broadcast %cst_126 : f32 to vector<8x32xf32>
    %401 = arith.select %399, %389, %400 : vector<8x32xi1>, vector<8x32xf32>
    %c0_127 = arith.constant 0 : index
    %402 = arith.index_cast %354 : i32 to index
    %c0_128 = arith.constant 0 : index
    %c0_129 = arith.constant 0 : index
    %403 = vector.load %arg6[%c0_127, %402, %c0_128, %c0_129] : memref<1x8x8x32xf32, #tpu.memory_space<vmem>>, vector<1x1x8x32xf32>
    %404 = vector.shape_cast %403 : vector<1x1x8x32xf32> to vector<8x32xf32>
    %405 = vector.shape_cast %401 : vector<8x32xf32> to vector<1x1x8x32xf32>
    tpu.vector_store %arg6[%c0_127, %402, %c0_128, %c0_129], %405 {strides = array<i32>} : memref<1x8x8x32xf32, #tpu.memory_space<vmem>>, vector<1x1x8x32xf32>,
    %c7_i32_130 = arith.constant 7 : i32
    %c7_i32_131 = arith.constant 7 : i32
    %406 = arith.muli %arg0, %c7_i32_131 : i32
    %c2_i32_132 = arith.constant 2 : i32
    %407 = arith.muli %c2_i32_132, %arg0 : i32
    %c1_i32_133 = arith.constant 1 : i32
    %408 = arith.subi %c1_i32_133, %407 : i32
    %409 = arith.muli %408, %c7_i32_130 : i32
    %410 = arith.addi %406, %409 : i32
    %411 = arith.addi %11, %410 : i32
    %c0_134 = arith.constant 0 : index
    %412 = arith.index_cast %410 : i32 to index
    %c0_135 = arith.constant 0 : index
    %c0_136 = arith.constant 0 : index
    %413 = vector.load %arg2[%c0_134, %412, %c0_135, %c0_136] : memref<1x8x8x128xf32, #tpu.memory_space<vmem>>, vector<1x1x8x128xf32>
    %414 = vector.shape_cast %413 : vector<1x1x8x128xf32> to vector<8x128xf32>
    %415 = vector.broadcast %5 : vector<1x128xf32> to vector<8x128xf32>
    %416 = arith.addf %414, %415 : vector<8x128xf32>
    %c0_137 = arith.constant 0 : index
    %c0_138 = arith.constant 0 : index
    %c0_139 = arith.constant 0 : index
    %417 = vector.load %arg3[%c0_137, %c0_138, %c0_139] : memref<1x32x128xf32, #tpu.memory_space<vmem>>, vector<1x32x128xf32>
    %418 = vector.shape_cast %417 : vector<1x32x128xf32> to vector<32x128xf32>
    %cst_140 = arith.constant dense<0.000000e+00> : vector<8x128xf32>
    %419 = tpu.matmul %394, %418, %cst_140 {dimension_numbers = #tpu.dot_dimension_numbers<[1], [0], [0], [1], [0, 0, 1, 1], [], []>} : vector<8x32xf32>, vector<32x128xf32>, vector<8x128xf32> -> vector<8x128xf32>
    %420 = arith.addf %416, %419 : vector<8x128xf32>
    %421 = vector.extract_strided_slice %420 {offsets = [0, 0], sizes = [8, 32], strides = [1, 1]} : vector<8x128xf32> to vector<8x32xf32>
    %422 = arith.negf %421 : vector<8x32xf32>
    %423 = math.exp %422 : vector<8x32xf32>
    %cst_141 = arith.constant 1.000000e+00 : f32
    %424 = vector.broadcast %cst_141 : f32 to vector<8x32xf32>
    %425 = arith.addf %424, %423 : vector<8x32xf32>
    %426 = arith.divf %424, %425 : vector<8x32xf32>
    %427 = vector.extract_strided_slice %420 {offsets = [0, 32], sizes = [8, 32], strides = [1, 1]} : vector<8x128xf32> to vector<8x32xf32>
    %428 = arith.negf %427 : vector<8x32xf32>
    %429 = math.exp %428 : vector<8x32xf32>
    %cst_142 = arith.constant 1.000000e+00 : f32
    %430 = vector.broadcast %cst_142 : f32 to vector<8x32xf32>
    %431 = arith.addf %430, %429 : vector<8x32xf32>
    %432 = arith.divf %430, %431 : vector<8x32xf32>
    %433 = vector.extract_strided_slice %420 {offsets = [0, 64], sizes = [8, 32], strides = [1, 1]} : vector<8x128xf32> to vector<8x32xf32>
    %434 = math.tanh %433 : vector<8x32xf32>
    %435 = vector.extract_strided_slice %420 {offsets = [0, 96], sizes = [8, 32], strides = [1, 1]} : vector<8x128xf32> to vector<8x32xf32>
    %436 = arith.negf %435 : vector<8x32xf32>
    %437 = math.exp %436 : vector<8x32xf32>
    %cst_143 = arith.constant 1.000000e+00 : f32
    %438 = vector.broadcast %cst_143 : f32 to vector<8x32xf32>
    %439 = arith.addf %438, %437 : vector<8x32xf32>
    %440 = arith.divf %438, %439 : vector<8x32xf32>
    %441 = arith.mulf %432, %397 : vector<8x32xf32>
    %442 = arith.mulf %426, %434 : vector<8x32xf32>
    %443 = arith.addf %441, %442 : vector<8x32xf32>
    %444 = math.tanh %443 : vector<8x32xf32>
    %445 = arith.mulf %440, %444 : vector<8x32xf32>
    %446 = vector.broadcast %411 : i32 to vector<8x1xi32>
    %447 = arith.cmpi sgt, %3, %446 : vector<8x1xi32>
    %448 = vector.shape_cast %447 : vector<8x1xi1> to vector<8x1xi1>
    %449 = vector.broadcast %448 : vector<8x1xi1> to vector<8x32xi1>
    %450 = arith.select %449, %445, %394 : vector<8x32xi1>, vector<8x32xf32>
    %451 = vector.shape_cast %447 : vector<8x1xi1> to vector<8x1xi1>
    %452 = vector.broadcast %451 : vector<8x1xi1> to vector<8x32xi1>
    %453 = arith.select %452, %443, %397 : vector<8x32xi1>, vector<8x32xf32>
    %cst_144 = arith.constant 0.000000e+00 : f32
    %454 = vector.shape_cast %447 : vector<8x1xi1> to vector<8x1xi1>
    %455 = vector.broadcast %454 : vector<8x1xi1> to vector<8x32xi1>
    %456 = vector.broadcast %cst_144 : f32 to vector<8x32xf32>
    %457 = arith.select %455, %445, %456 : vector<8x32xi1>, vector<8x32xf32>
    %c0_145 = arith.constant 0 : index
    %458 = arith.index_cast %410 : i32 to index
    %c0_146 = arith.constant 0 : index
    %c0_147 = arith.constant 0 : index
    %459 = vector.load %arg6[%c0_145, %458, %c0_146, %c0_147] : memref<1x8x8x32xf32, #tpu.memory_space<vmem>>, vector<1x1x8x32xf32>
    %460 = vector.shape_cast %459 : vector<1x1x8x32xf32> to vector<8x32xf32>
    %461 = vector.shape_cast %457 : vector<8x32xf32> to vector<1x1x8x32xf32>
    tpu.vector_store %arg6[%c0_145, %458, %c0_146, %c0_147], %461 {strides = array<i32>} : memref<1x8x8x32xf32, #tpu.memory_space<vmem>>, vector<1x1x8x32xf32>,
    %c8_i32_148 = arith.constant 8 : i32
    %c0_149 = arith.constant 0 : index
    %c0_150 = arith.constant 0 : index
    %462 = vector.load %arg7[%c0_149, %c0_150] : memref<8x32xf32, #tpu.memory_space<vmem>>, vector<8x32xf32>
    tpu.vector_store %arg7[%c0_149, %c0_150], %450 {strides = array<i32>} : memref<8x32xf32, #tpu.memory_space<vmem>>, vector<8x32xf32>,
    %c0_151 = arith.constant 0 : index
    %c0_152 = arith.constant 0 : index
    %463 = vector.load %arg8[%c0_151, %c0_152] : memref<8x32xf32, #tpu.memory_space<vmem>>, vector<8x32xf32>
    tpu.vector_store %arg8[%c0_151, %c0_152], %453 {strides = array<i32>} : memref<8x32xf32, #tpu.memory_space<vmem>>, vector<8x32xf32>,
    return
  }
  func.func @transform_0(%arg0: i32, %arg1: i32) -> (i32, i32, i32, i32) {
    %c0_i32 = arith.constant 0 : i32
    %0 = arith.muli %arg0, %c0_i32 : i32
    %c2_i32 = arith.constant 2 : i32
    %1 = arith.muli %c2_i32, %arg0 : i32
    %c1_i32 = arith.constant 1 : i32
    %2 = arith.subi %c1_i32, %1 : i32
    %3 = arith.muli %2, %arg1 : i32
    %4 = arith.addi %0, %3 : i32
    %c0_i32_0 = arith.constant 0 : i32
    %c0_i32_1 = arith.constant 0 : i32
    %c0_i32_2 = arith.constant 0 : i32
    return %arg0, %4, %c0_i32_0, %c0_i32_1 : i32, i32, i32, i32
  }
  func.func @transform_1(%arg0: i32, %arg1: i32) -> (i32, i32, i32) {
    %c0_i32 = arith.constant 0 : i32
    %c0_i32_0 = arith.constant 0 : i32
    %c0_i32_1 = arith.constant 0 : i32
    return %arg0, %c0_i32, %c0_i32_0 : i32, i32, i32
  }
  func.func @transform_2(%arg0: i32, %arg1: i32) -> (i32, i32, i32) {
    %c0_i32 = arith.constant 0 : i32
    %c0_i32_0 = arith.constant 0 : i32
    %c0_i32_1 = arith.constant 0 : i32
    return %arg0, %c0_i32, %c0_i32_0 : i32, i32, i32
  }
  func.func @transform_3(%arg0: i32, %arg1: i32) -> (i32, i32) {
    %c0_i32 = arith.constant 0 : i32
    %c0_i32_0 = arith.constant 0 : i32
    %c0_i32_1 = arith.constant 0 : i32
    return %c0_i32, %c0_i32_0 : i32, i32
  }
  func.func @transform_4(%arg0: i32, %arg1: i32) -> (i32, i32, i32, i32) {
    %c0_i32 = arith.constant 0 : i32
    %0 = arith.muli %arg0, %c0_i32 : i32
    %c2_i32 = arith.constant 2 : i32
    %1 = arith.muli %c2_i32, %arg0 : i32
    %c1_i32 = arith.constant 1 : i32
    %2 = arith.subi %c1_i32, %1 : i32
    %3 = arith.muli %2, %arg1 : i32
    %4 = arith.addi %0, %3 : i32
    %c0_i32_0 = arith.constant 0 : i32
    %c0_i32_1 = arith.constant 0 : i32
    %c0_i32_2 = arith.constant 0 : i32
    return %arg0, %4, %c0_i32_0, %c0_i32_1 : i32, i32, i32, i32
  }
}

</mosaic_0001>

<llo_original>
// kernel: tpu_custom_call.1
$region0: #{tpu_custom_call.1}
  #allocation0 [shape = 'u32[]', space=smem, size = 0x4, offset = 0x4, fixed_abs, tag = 'smem constant byte address 0x4 - core index']
  #allocation1 [shape = 'u32[72,128]{1,0:T(1,128)}', space=vmem, size = 0x9000, scoped, tag = 'internal scratch']
  #allocation2 [shape = 'f32[8,32]{1,0:T(8,128)}', space=vmem, size = 0x1000, scoped, tag = 'scratch operand']
  #allocation3 [shape = 'f32[8,32]{1,0:T(8,128)}', space=vmem, size = 0x1000, scoped, tag = 'scratch operand']
  %s0 = inlined_call_operand.hbm [shape: f32[2,8,8,128], index: 0, kind: input, shape index: {}]
  %s1 = inlined_call_operand.hbm [shape: f32[2,32,128], index: 1, kind: input, shape index: {}]
  %s2 = inlined_call_operand.vmem [shape: f32[2,1,128], index: 2, kind: input, shape index: {}]
  %s3 = inlined_call_operand.vmem [shape: s32[8,1], index: 3, kind: input, shape index: {}]
  %s4 = inlined_call_operand.hbm [shape: f32[2,8,8,32], index: 4, kind: output, shape index: {}]
  %s5 = sld [smem:[#allocation0]]
  $region61: #{tpu_custom_call.1} parent=0
    _
  %s7 = ssub.s32 1, %s5
  %s8 = scalar_select 0, %s7, %s5
  $region1: #{tpu_custom_call.1} parent=0
    #allocation4 [shape = 'u8[65536]{0}', space=vmem, size = 0x10000, scoped, tag = 'input window, operand 0']
    #allocation5 [shape = 's32[2]{0}', space=sflag, size = 0x8, scoped, tag = 'scoped memory for tpu_custom_call.1']
    #allocation6 [shape = 's32[2]{0}', space=sflag, size = 0x8, scoped, tag = 'scoped memory for tpu_custom_call.1']
    #allocation7 [shape = 'u8[32768]{0}', space=vmem, size = 0x8000, scoped, tag = 'input window, operand 1']
    #allocation8 [shape = 's32[2]{0}', space=sflag, size = 0x8, scoped, tag = 'scoped memory for tpu_custom_call.1']
    #allocation9 [shape = 'u8[65536]{0}', space=vmem, size = 0x10000, scoped, tag = 'output window, operand 0']
    %9 = vsyncpa [#allocation5], 0
    %s10 = scalar_lea.sflag [#allocation5], 1
    %11 = vsyncpa %s10, 0
    %12 = vsyncpa [#allocation8], 0
    %s13 = scalar_lea.sflag [#allocation8], 1
    %14 = vsyncpa %s13, 0
    %15 = vsyncpa [#allocation6], 0
    %s16 = scalar_lea.sflag [#allocation6], 1
    %17 = vsyncpa %s16, 0
    loop: start=0, step=1, limit=4
    $region2: #{tpu_custom_call.1} parent=1 // loop_pre_header
      _
    $region3: #{tpu_custom_call.1} parent=1 // loop_header
      %s19 = sphi 0, %s23
      %p20 = scmp.ge.s32.totalorder %s19, 4
      %s26 = sphi 0, %s38
      %s27 = sphi 0, %s34
      %s28 = sphi 0, %s26
      %s29 = sphi 0, %s27
      %s30 = sphi 0, %s28
      %s31 = sphi 0, %s29
      %s49 = sphi 0, %s51
      %s52 = sphi 0, %s49
      %s53 = sphi 0, %s52
      %s69 = sphi 0, %s53
      %s75 = sphi 0, %s77
      %s78 = sphi 0, %s75
      %s79 = sphi 0, %s78
      %s95 = sphi 0, %s79
      %s101 = sphi 0, %s103
      %s104 = sphi 0, %s101
      %s105 = sphi 0, %s104
      %s121 = sphi 0, %s105
      %s125 = sphi 0, %s125
      %s127 = sphi 0, %s125
      %s128 = sphi 0, %s127
      %s142 = sphi 0, %s128
      %s156 = sphi 0, %s158
      %s159 = sphi 0, %s156
      %s160 = sphi 0, %s159
      %s176 = sphi 0, %s160
    $region4: #{tpu_custom_call.1} parent=1 // loop_header_branch
      %22 = sbr.rel (%p20) target = $region8
    $region5: #{tpu_custom_call.1} parent=1 // loop_body
      %s24 = ssub.s32 %s19, 1
      %s25 = ssub.s32 %s19, 2
      %s32 = sadd.s32 1, %s27
      %p33 = scmp.ge.s32.totalorder %s32, 1
      %s34 = scalar_select %p33, 0, %s32
      %s35 = sadd.s32 1, %s26
      %s36 = scalar_select %p33, %s35, %s26
      %p37 = scmp.ge.s32.totalorder %s36, 2
      %s38 = scalar_select %p37, 0, %s36
      %s39 = smul.u32 %s26, 2
      %s40 = ssub.s32 1, %s39
      %s41 = smul.u32 %s40, %s27
      %s42 = smul.u32 %s38, 2
      %s43 = ssub.s32 1, %s42
      %s44 = smul.u32 %s43, %s34
      %s45 = ssub.s32 %s26, %s38
      %s46 = ssub.s32 %s41, %s44
      %s47 = sor.u32 %s45, %s46
      %p48 = scmp.eq.s32.totalorder %s47, 0
      %s50 = sadd.s32 %s49, 1
      %s51 = scalar_select %p48, %s49, %s50
      %p54 = pneg %p48
      %p55 = scmp.eq.s32.totalorder %s19, 1
      %p56 = por %p54, %p55
      %p57 = scmp.ne.s32.totalorder %s49, %s52
      %p58 = scmp.eq.s32.totalorder %s19, 0
      %p59 = por %p57, %p58
      %p60 = scmp.ne.s32.totalorder %s49, %s52
      %p61 = scmp.eq.s32.totalorder %s24, 1
      %p62 = por %p60, %p61
      %p63 = scmp.ne.s32.totalorder %s52, %s53
      %p64 = scmp.eq.s32.totalorder %s24, 0
      %p65 = por %p63, %p64
      %p66 = scmp.ne.s32.totalorder %s52, %s53
      %p67 = scmp.eq.s32.totalorder %s25, 1
      %p68 = por %p66, %p67
      %p70 = scmp.ne.s32.totalorder %s53, %s69
      %p71 = scmp.eq.s32.totalorder %s25, 0
      %p72 = por %p70, %p71
      %s73 = ssub.s32 %s26, %s38
      %p74 = scmp.eq.s32.totalorder %s73, 0
      %s76 = sadd.s32 %s75, 1
      %s77 = scalar_select %p74, %s75, %s76
      %p80 = pneg %p74
      %p81 = scmp.eq.s32.totalorder %s19, 1
      %p82 = por %p80, %p81
      %p83 = scmp.ne.s32.totalorder %s75, %s78
      %p84 = scmp.eq.s32.totalorder %s19, 0
      %p85 = por %p83, %p84
      %p86 = scmp.ne.s32.totalorder %s75, %s78
      %p87 = scmp.eq.s32.totalorder %s24, 1
      %p88 = por %p86, %p87
      %p89 = scmp.ne.s32.totalorder %s78, %s79
      %p90 = scmp.eq.s32.totalorder %s24, 0
      %p91 = por %p89, %p90
      %p92 = scmp.ne.s32.totalorder %s78, %s79
      %p93 = scmp.eq.s32.totalorder %s25, 1
      %p94 = por %p92, %p93
      %p96 = scmp.ne.s32.totalorder %s79, %s95
      %p97 = scmp.eq.s32.totalorder %s25, 0
      %p98 = por %p96, %p97
      %s99 = ssub.s32 %s26, %s38
      %p100 = scmp.eq.s32.totalorder %s99, 0
      %s102 = sadd.s32 %s101, 1
      %s103 = scalar_select %p100, %s101, %s102
      %p106 = pneg %p100
      %p107 = scmp.eq.s32.totalorder %s19, 1
      %p108 = por %p106, %p107
      %p109 = scmp.ne.s32.totalorder %s101, %s104
      %p110 = scmp.eq.s32.totalorder %s19, 0
      %p111 = por %p109, %p110
      %p112 = scmp.ne.s32.totalorder %s101, %s104
      %p113 = scmp.eq.s32.totalorder %s24, 1
      %p114 = por %p112, %p113
      %p115 = scmp.ne.s32.totalorder %s104, %s105
      %p116 = scmp.eq.s32.totalorder %s24, 0
      %p117 = por %p115, %p116
      %p118 = scmp.ne.s32.totalorder %s104, %s105
      %p119 = scmp.eq.s32.totalorder %s25, 1
      %p120 = por %p118, %p119
      %p122 = scmp.ne.s32.totalorder %s105, %s121
      %p123 = scmp.eq.s32.totalorder %s25, 0
      %p124 = por %p122, %p123
      %s126 = sadd.s32 %s125, 1
      %p129 = scmp.eq.s32.totalorder %s19, 1
      %p130 = scmp.ne.s32.totalorder %s125, %s127
      %p131 = scmp.eq.s32.totalorder %s19, 0
      %p132 = por %p130, %p131
      %p133 = scmp.ne.s32.totalorder %s125, %s127
      %p134 = scmp.eq.s32.totalorder %s24, 1
      %p135 = por %p133, %p134
      %p136 = scmp.ne.s32.totalorder %s127, %s128
      %p137 = scmp.eq.s32.totalorder %s24, 0
      %p138 = por %p136, %p137
      %p139 = scmp.ne.s32.totalorder %s127, %s128
      %p140 = scmp.eq.s32.totalorder %s25, 1
      %p141 = por %p139, %p140
      %p143 = scmp.ne.s32.totalorder %s128, %s142
      %p144 = scmp.eq.s32.totalorder %s25, 0
      %p145 = por %p143, %p144
      %s146 = smul.u32 %s26, 2
      %s147 = ssub.s32 1, %s146
      %s148 = smul.u32 %s147, %s27
      %s149 = smul.u32 %s38, 2
      %s150 = ssub.s32 1, %s149
      %s151 = smul.u32 %s150, %s34
      %s152 = ssub.s32 %s26, %s38
      %s153 = ssub.s32 %s148, %s151
      %s154 = sor.u32 %s152, %s153
      %p155 = scmp.eq.s32.totalorder %s154, 0
      %s157 = sadd.s32 %s156, 1
      %s158 = scalar_select %p155, %s156, %s157
      %p161 = pneg %p155
      %p162 = scmp.eq.s32.totalorder %s19, 1
      %p163 = por %p161, %p162
      %p164 = scmp.ne.s32.totalorder %s156, %s159
      %p165 = scmp.eq.s32.totalorder %s19, 0
      %p166 = por %p164, %p165
      %p167 = scmp.ne.s32.totalorder %s156, %s159
      %p168 = scmp.eq.s32.totalorder %s24, 1
      %p169 = por %p167, %p168
      %p170 = scmp.ne.s32.totalorder %s159, %s160
      %p171 = scmp.eq.s32.totalorder %s24, 0
      %p172 = por %p170, %p171
      %p173 = scmp.ne.s32.totalorder %s159, %s160
      %p174 = scmp.eq.s32.totalorder %s25, 1
      %p175 = por %p173, %p174
      %p177 = scmp.ne.s32.totalorder %s160, %s176
      %p178 = scmp.eq.s32.totalorder %s25, 0
      %p179 = por %p177, %p178
      %p180 = scmp.le.s32.totalorder 1, %s19
      %p181 = scmp.lt.s32.totalorder %s19, 3
      %p182 = pnand %p180, %p181
      %p183 = pneg %p182
      // Predicated region
      $region9: #{tpu_custom_call.1} parent=5 // pred_check
        _
      $region10: #{tpu_custom_call.1} parent=5 // pred_check_branch
        %185 = sbr.rel (%p182) target = $region12
      $region11: #{tpu_custom_call.1} parent=5 // pred_region
        %s186 = ssub.s32 %s19, 1
        // Predicated region
        $region13: #{tpu_custom_call.1} parent=11 // pred_check
          %p187 = pneg %p138
        $region14: #{tpu_custom_call.1} parent=11 // pred_check_branch
          %189 = sbr.rel (%p187) target = $region16
        $region15: #{tpu_custom_call.1} parent=11 // pred_region
          _
        $region16: #{tpu_custom_call.1} parent=11 // pred_fallthru
          _
      $region12: #{tpu_custom_call.1} parent=5 // pred_fallthru
        _
      %p190 = scmp.lt.s32.totalorder %s19, 2
      // Predicated region
      $region17: #{tpu_custom_call.1} parent=5 // pred_check
        %p191 = pneg %p190
      $region18: #{tpu_custom_call.1} parent=5 // pred_check_branch
        %193 = sbr.rel (%p191) target = $region20
      $region19: #{tpu_custom_call.1} parent=5 // pred_region
        // Predicated region
        $region21: #{tpu_custom_call.1} parent=19 // pred_check
          %p194 = pneg %p59
        $region22: #{tpu_custom_call.1} parent=19 // pred_check_branch
          %196 = sbr.rel (%p194) target = $region24
        $region23: #{tpu_custom_call.1} parent=19 // pred_region
          %s197 = sand.u32 %s49, 1
          %s198 = scalar_lea.sflag [#allocation5], %s197
          %s199 = sand.u32 %s49, 1
          %s200 = smul.addr %s199, 64
          %s201 = scalar_lea.vmem [#allocation4], %s200
          %s202 = smul.u32 %s26, 2
          %s203 = ssub.s32 1, %s202
          %s204 = smul.u32 %s203, %s27
          %s205 = smul.u32 8, %s204
          %207 = vsyncadd %s198, 0
          %s208 = smul.addr %s26, 8
          %s209 = sadd.s32 %s205, %s208
          %s210 = smul.addr %s209, 8
          %s211 = scalar_lea.hbm %s0, %s210
          %s212 = sshll.u32 %s211, 4
          %s213 = int_to_ptr.hbm [resolvable:$true] %s212
          %s214 = sshll.u32 %s201, 4
          %s215 = int_to_ptr.vmem [resolvable:$true] %s214
          %220 = dma.hbm_to_vmem [thread:$0]  %s213, 1024, %s215, %s198, 128, 128, 8
        $region24: #{tpu_custom_call.1} parent=19 // pred_fallthru
          _
        // Predicated region
        $region25: #{tpu_custom_call.1} parent=19 // pred_check
          %p221 = pneg %p85
        $region26: #{tpu_custom_call.1} parent=19 // pred_check_branch
          %223 = sbr.rel (%p221) target = $region28
        $region27: #{tpu_custom_call.1} parent=19 // pred_region
          %s224 = sand.u32 %s75, 1
          %s225 = scalar_lea.sflag [#allocation8], %s224
          %s226 = sand.u32 %s75, 1
          %s227 = smul.addr %s226, 32
          %s228 = scalar_lea.vmem [#allocation7], %s227
          %230 = vsyncadd %s225, 0
          %s231 = smul.addr %s26, 4
          %s232 = smul.addr %s231, 8
          %s233 = scalar_lea.hbm %s1, %s232
          %s234 = sshll.u32 %s233, 4
          %s235 = int_to_ptr.hbm [resolvable:$true] %s234
          %s236 = sshll.u32 %s228, 4
          %s237 = int_to_ptr.vmem [resolvable:$true] %s236
          %242 = dma.hbm_to_vmem [thread:$0]  %s235, 512, %s237, %s225, 128, 128, 8
        $region28: #{tpu_custom_call.1} parent=19 // pred_fallthru
          _
        // Predicated region
        $region29: #{tpu_custom_call.1} parent=19 // pred_check
          %p243 = pneg %p111
        $region30: #{tpu_custom_call.1} parent=19 // pred_check_branch
          %245 = sbr.rel (%p243) target = $region32
        $region31: #{tpu_custom_call.1} parent=19 // pred_region
          %p246 = scmp.lt.s32.totalorder %s26, 1
          %s247 = scalar_select %p246, %s26, 1
          %s248 = scalar_lea.vmem %s2, %s247
        $region32: #{tpu_custom_call.1} parent=19 // pred_fallthru
          _
      $region20: #{tpu_custom_call.1} parent=5 // pred_fallthru
        _
      %p249 = scmp.le.s32.totalorder 1, %s19
      %p250 = scmp.lt.s32.totalorder %s19, 3
      %p251 = pnand %p249, %p250
      %p252 = pneg %p251
      // Predicated region
      $region33: #{tpu_custom_call.1} parent=5 // pred_check
        _
      $region34: #{tpu_custom_call.1} parent=5 // pred_check_branch
        %254 = sbr.rel (%p251) target = $region36
      $region35: #{tpu_custom_call.1} parent=5 // pred_region
        %s255 = ssub.s32 %s19, 1
        %s256 = sand.u32 %s52, 1
        %s257 = scalar_lea.sflag [#allocation5], %s256
        %s258 = sand.u32 %s52, 1
        %s259 = smul.addr %s258, 64
        %s260 = scalar_lea.vmem [#allocation4], %s259
        // Predicated region
        $region37: #{tpu_custom_call.1} parent=35 // pred_check
          %p261 = pneg %p65
        $region38: #{tpu_custom_call.1} parent=35 // pred_check_branch
          %263 = sbr.rel (%p261) target = $region40
        $region39: #{tpu_custom_call.1} parent=35 // pred_region
          %265 = dma.done %s257, 1024
        $region40: #{tpu_custom_call.1} parent=35 // pred_fallthru
          _
        %s266 = sand.u32 %s78, 1
        %s267 = scalar_lea.sflag [#allocation8], %s266
        %s268 = sand.u32 %s78, 1
        %s269 = smul.addr %s268, 32
        %s270 = scalar_lea.vmem [#allocation7], %s269
        // Predicated region
        $region41: #{tpu_custom_call.1} parent=35 // pred_check
          %p271 = pneg %p91
        $region42: #{tpu_custom_call.1} parent=35 // pred_check_branch
          %273 = sbr.rel (%p271) target = $region44
        $region43: #{tpu_custom_call.1} parent=35 // pred_region
          %275 = dma.done %s267, 512
        $region44: #{tpu_custom_call.1} parent=35 // pred_fallthru
          _
        %s276 = sand.u32 %s52, 1
        %s277 = scalar_lea.sflag [#allocation5], %s276
        %s278 = sand.u32 %s52, 1
        %s279 = smul.addr %s278, 64
        %s280 = scalar_lea.vmem [#allocation4], %s279
        %p281 = pneg %p65
        %p282 = pneg %p62
        %s283 = sand.u32 %s78, 1
        %s284 = scalar_lea.sflag [#allocation8], %s283
        %s285 = sand.u32 %s78, 1
        %s286 = smul.addr %s285, 32
        %s287 = scalar_lea.vmem [#allocation7], %s286
        %p288 = pneg %p91
        %p289 = pneg %p88
        %p290 = scmp.lt.s32.totalorder %s28, 1
        %s291 = scalar_select %p290, %s28, 1
        %s292 = scalar_lea.vmem %s2, %s291
        %p293 = pneg %p117
        %p294 = pneg %p114
        %p295 = pneg %p138
        %p296 = pneg %p135
        %p297 = pneg %p172
        %p298 = pneg %p169
        %s299 = sand.u32 %s159, 1
        %s300 = scalar_lea.sflag [#allocation6], %s299
        %s301 = sand.u32 %s159, 1
        %s302 = smul.addr %s301, 64
        %s303 = scalar_lea.vmem [#allocation9], %s302
        %s304 = smul.u32 %s28, 2
        %s305 = ssub.s32 1, %s304
        %s306 = smul.u32 %s305, %s29
        %s307 = smul.u32 8, %s306
        %p308 = scmp.lt.s32.totalorder %s28, 1
        %s309 = scalar_select %p308, %s28, 1
        %s310 = scalar_lea.vmem %s2, %s309
        %s311 = smul.u32 %s28, 2
        %s312 = ssub.s32 1, %s311
        %s313 = smul.u32 %s312, %s29
        %s314 = smul.u32 8, %s313
        %p315 = scmp.eq.s32.totalorder %s29, 0
        // Predicated region
        $region45: #{tpu_custom_call.1} parent=35 // pred_check
          %p316 = pneg %p315
        $region46: #{tpu_custom_call.1} parent=35 // pred_check_branch
          %318 = sbr.rel (%p316) target = $region48
        $region47: #{tpu_custom_call.1} parent=35 // pred_region
          %vm319 = vcmask 261120
          %320 = vst.msk [vmem:[#allocation2] sm:$0xff] %vm319, 0.0
          %321 = vst.msk [vmem:[#allocation3] sm:$0xff] %vm319, 0.0
        $region48: #{tpu_custom_call.1} parent=35 // pred_fallthru
          _
        %v322 = vld [vmem:[%s3] sm:$0xff]
        %v323 = vld [vmem:[%s310] sm:$0x1]
        %s324 = smul.u32 %s28, 2
        %s325 = ssub.s32 1, %s324
        %s326 = smul.u32 %s325, %s29
        %s327 = smul.u32 %s326, 8
        %v328 = vld [vmem:[#allocation2] sm:$0xff]
        %v329 = vld [vmem:[#allocation3] sm:$0xff]
        %s330 = smul.u32 %s28, 7
        %s331 = sadd.s32 %s327, %s330
        %s332 = smul.u32 %s330, 8
        %s333 = scalar_lea.vmem %s260, %s332 [#allocation4]
        %v334 = vld [vmem:[%s333] sm:$0xff]
        %v336 = vperm.slane %v323, 0
        %v338 = vadd.f32 %v334, %v336
        %v339 = vld [vmem:[%s270] sm:$0xff]
        %v340 = vld [vmem:[%s270 + $0x8] sm:$0xff]
        %v341 = vld [vmem:[%s270 + $0x10] sm:$0xff]
        %v342 = vld [vmem:[%s270 + $0x18] sm:$0xff]
        %vm343 = vcmask 261120
        %v345 = vsel %vm343, %v328, 0
        %347 = vmatpush.msra.mxu0 0.0
        %348 = vmatpush.msra.mxu0 0.0
        %349 = vmatpush.msra.mxu0 0.0
        %350 = vmatpush.msra.mxu0 0.0
        %351 = vmatpush.msra.mxu0 0.0
        %352 = vmatpush.msra.mxu0 0.0
        %353 = vmatpush.msra.mxu0 0.0
        %354 = vmatpush.msra.mxu0 0.0
        %355 = vmatpush.msra.mxu0 0.0
        %356 = vmatpush.msra.mxu0 0.0
        %357 = vmatpush.msra.mxu0 0.0
        %358 = vmatpush.msra.mxu0 0.0
        %359 = vmatpush.msra.mxu0 %v342
        %360 = vmatpush.msra.mxu0 %v341
        %361 = vmatpush.msra.mxu0 %v340
        %362 = vmatpush.msra.mxu0 %v339
        %363 = vmatmul.f32.gmra.mxu0 %v345
        %v364 = vpop.f32.mrf.mxu0
        %v365 = vadd.f32 0.0, %v364
        %366 = vdwg.mxu0
        %v367 = vadd.f32 %v338, %v365
        %v368 = vxor.u32 %v367, 2147483648
        %v369 = vmul.f32 %v368, 1.442695
        %v370 = vpow.pop %v369
        %v371 = vadd.f32 %v370, 1.0
        %v372 = vrcp.pop %v371
        %v373 = vmul.f32 %v371, %v372
        %v374 = vsub.f32 1.0, %v373
        %v375 = vmul.f32 %v372, %v374
        %v376 = vadd.f32 %v372, %v375
        %vm377 = vweird.f32 %v371
        %vm378 = vweird.f32 %v372
        %vm379 = vmor %vm377, %vm378
        %v380 = vsel %vm379, %v372, %v376
        %v381 = vand.u32 2147483647, %v371
        %vm382 = vcmp.eq.f32.partialorder %v381, 8.507059e+37
        %v383 = vand.u32 %v371, 2147483648
        %v384 = vor.u32 1.1754944e-38, %v383
        %v385 = vsel %vm382, %v384, %v380
        %v386 = vmul.f32 1.0, %v385
        %v387 = vtanh.pop %v367
        %389 = vrot.lane.b32.xlu0 %v329, 32
        %v390 = vpop.permute.xlu0 %389
        %v392 = vmul.f32 %v386, %v390
        %394 = vrot.lane.b32.xlu0 %v387, 64
        %v395 = vpop.permute.xlu0 %394
        %v397 = vmul.f32 %v386, %v395
        %399 = vrot.lane.b32.xlu0 %v397, 32
        %v400 = vpop.permute.xlu0 %399
        %v402 = vadd.f32 %v392, %v400
        %v403 = vtanh.pop %v402
        %405 = vrot.lane.b32.xlu0 %v403, 64
        %v406 = vpop.permute.xlu0 %405
        %v408 = vmul.f32 %v386, %v406
        %v409 = vstv %s331
        %vm410 = vcmp.gt.s32.totalorder %v322, %v409
        %v411 = vsel %vm410, 1, 0
        %412 = vset.pattern.permute.xlu0 0
        %413 = vperm.xlu0 %412, %v411
        %v414 = vpop.permute.xlu0 %413
        %vm415 = vcmp.eq.s32.totalorder %v414, 1
        %416 = vrot.lane.b32.xlu0 %v328, 96
        %v417 = vpop.permute.xlu0 %416
        %v419 = vsel %vm415, %v408, %v417
        %v420 = vsel %vm415, %v402, %v390
        %v421 = vsel %vm415, %v408, 0.0
        %423 = vrot.lane.b32.xlu0 %v421, 32
        %v424 = vpop.permute.xlu0 %423
        %s426 = scalar_lea.vmem %s303, %s332 [#allocation9]
        %427 = vst.msk [vmem:[%s426] sm:$0xff] %vm343, %v424
        %s428 = sadd.s32 %s330, %s325
        %s429 = sadd.s32 %s327, %s428
        %s430 = smul.u32 %s428, 8
        %s431 = scalar_lea.vmem %s260, %s430 [#allocation4]
        %v432 = vld [vmem:[%s431] sm:$0xff]
        %v433 = vadd.f32 %v432, %v336
        %v434 = vld [vmem:[%s270] sm:$0xff]
        %v435 = vld [vmem:[%s270 + $0x8] sm:$0xff]
        %v436 = vld [vmem:[%s270 + $0x10] sm:$0xff]
        %v437 = vld [vmem:[%s270 + $0x18] sm:$0xff]
        %439 = vrot.lane.b32.xlu0 %v419, 32
        %v440 = vpop.permute.xlu0 %439
        %v441 = vsel %vm343, %v440, 0
        %443 = vmatpush.msra.mxu0 0.0
        %444 = vmatpush.msra.mxu0 0.0
        %445 = vmatpush.msra.mxu0 0.0
        %446 = vmatpush.msra.mxu0 0.0
        %447 = vmatpush.msra.mxu0 0.0
        %448 = vmatpush.msra.mxu0 0.0
        %449 = vmatpush.msra.mxu0 0.0
        %450 = vmatpush.msra.mxu0 0.0
        %451 = vmatpush.msra.mxu0 0.0
        %452 = vmatpush.msra.mxu0 0.0
        %453 = vmatpush.msra.mxu0 0.0
        %454 = vmatpush.msra.mxu0 0.0
        %455 = vmatpush.msra.mxu0 %v437
        %456 = vmatpush.msra.mxu0 %v436
        %457 = vmatpush.msra.mxu0 %v435
        %458 = vmatpush.msra.mxu0 %v434
        %459 = vmatmul.f32.gmra.mxu0 %v441
        %v460 = vpop.f32.mrf.mxu0
        %v461 = vadd.f32 0.0, %v460
        %462 = vdwg.mxu0
        %v463 = vadd.f32 %v433, %v461
        %v464 = vxor.u32 %v463, 2147483648
        %v465 = vmul.f32 %v464, 1.442695
        %v466 = vpow.pop %v465
        %v467 = vadd.f32 %v466, 1.0
        %v468 = vrcp.pop %v467
        %v469 = vmul.f32 %v467, %v468
        %v470 = vsub.f32 1.0, %v469
        %v471 = vmul.f32 %v468, %v470
        %v472 = vadd.f32 %v468, %v471
        %vm473 = vweird.f32 %v467
        %vm474 = vweird.f32 %v468
        %vm475 = vmor %vm473, %vm474
        %v476 = vsel %vm475, %v468, %v472
        %v477 = vand.u32 2147483647, %v467
        %vm478 = vcmp.eq.f32.partialorder %v477, 8.507059e+37
        %v479 = vand.u32 %v467, 2147483648
        %v480 = vor.u32 1.1754944e-38, %v479
        %v481 = vsel %vm478, %v480, %v476
        %v482 = vmul.f32 1.0, %v481
        %v483 = vtanh.pop %v463
        %v484 = vmul.f32 %v482, %v420
        %486 = vrot.lane.b32.xlu0 %v483, 64
        %v487 = vpop.permute.xlu0 %486
        %v489 = vmul.f32 %v482, %v487
        %491 = vrot.lane.b32.xlu0 %v489, 32
        %v492 = vpop.permute.xlu0 %491
        %v494 = vadd.f32 %v484, %v492
        %v495 = vtanh.pop %v494
        %497 = vrot.lane.b32.xlu0 %v495, 64
        %v498 = vpop.permute.xlu0 %497
        %v500 = vmul.f32 %v482, %v498
        %v501 = vstv %s429
        %vm502 = vcmp.gt.s32.totalorder %v322, %v501
        %v503 = vsel %vm502, 1, 0
        %504 = vset.pattern.permute.xlu0 0
        %505 = vperm.xlu0 %504, %v503
        %v506 = vpop.permute.xlu0 %505
        %vm507 = vcmp.eq.s32.totalorder %v506, 1
        %v508 = vsel %vm507, %v500, %v419
        %v509 = vsel %vm507, %v494, %v420
        %v510 = vsel %vm507, %v500, 0.0
        %512 = vrot.lane.b32.xlu0 %v510, 32
        %v513 = vpop.permute.xlu0 %512
        %s515 = scalar_lea.vmem %s303, %s430 [#allocation9]
        %516 = vst.msk [vmem:[%s515] sm:$0xff] %vm343, %v513
        %s517 = smul.u32 %s325, 2
        %s518 = sadd.s32 %s330, %s517
        %s519 = sadd.s32 %s327, %s518
        %s520 = smul.u32 %s518, 8
        %s521 = scalar_lea.vmem %s260, %s520 [#allocation4]
        %v522 = vld [vmem:[%s521] sm:$0xff]
        %v523 = vadd.f32 %v522, %v336
        %v524 = vld [vmem:[%s270] sm:$0xff]
        %v525 = vld [vmem:[%s270 + $0x8] sm:$0xff]
        %v526 = vld [vmem:[%s270 + $0x10] sm:$0xff]
        %v527 = vld [vmem:[%s270 + $0x18] sm:$0xff]
        %529 = vrot.lane.b32.xlu0 %v508, 32
        %v530 = vpop.permute.xlu0 %529
        %v531 = vsel %vm343, %v530, 0
        %533 = vmatpush.msra.mxu0 0.0
        %534 = vmatpush.msra.mxu0 0.0
        %535 = vmatpush.msra.mxu0 0.0
        %536 = vmatpush.msra.mxu0 0.0
        %537 = vmatpush.msra.mxu0 0.0
        %538 = vmatpush.msra.mxu0 0.0
        %539 = vmatpush.msra.mxu0 0.0
        %540 = vmatpush.msra.mxu0 0.0
        %541 = vmatpush.msra.mxu0 0.0
        %542 = vmatpush.msra.mxu0 0.0
        %543 = vmatpush.msra.mxu0 0.0
        %544 = vmatpush.msra.mxu0 0.0
        %545 = vmatpush.msra.mxu0 %v527
        %546 = vmatpush.msra.mxu0 %v526
        %547 = vmatpush.msra.mxu0 %v525
        %548 = vmatpush.msra.mxu0 %v524
        %549 = vmatmul.f32.gmra.mxu0 %v531
        %v550 = vpop.f32.mrf.mxu0
        %v551 = vadd.f32 0.0, %v550
        %552 = vdwg.mxu0
        %v553 = vadd.f32 %v523, %v551
        %v554 = vxor.u32 %v553, 2147483648
        %v555 = vmul.f32 %v554, 1.442695
        %v556 = vpow.pop %v555
        %v557 = vadd.f32 %v556, 1.0
        %v558 = vrcp.pop %v557
        %v559 = vmul.f32 %v557, %v558
        %v560 = vsub.f32 1.0, %v559
        %v561 = vmul.f32 %v558, %v560
        %v562 = vadd.f32 %v558, %v561
        %vm563 = vweird.f32 %v557
        %vm564 = vweird.f32 %v558
        %vm565 = vmor %vm563, %vm564
        %v566 = vsel %vm565, %v558, %v562
        %v567 = vand.u32 2147483647, %v557
        %vm568 = vcmp.eq.f32.partialorder %v567, 8.507059e+37
        %v569 = vand.u32 %v557, 2147483648
        %v570 = vor.u32 1.1754944e-38, %v569
        %v571 = vsel %vm568, %v570, %v566
        %v572 = vmul.f32 1.0, %v571
        %v573 = vtanh.pop %v553
        %v574 = vmul.f32 %v572, %v509
        %576 = vrot.lane.b32.xlu0 %v573, 64
        %v577 = vpop.permute.xlu0 %576
        %v579 = vmul.f32 %v572, %v577
        %581 = vrot.lane.b32.xlu0 %v579, 32
        %v582 = vpop.permute.xlu0 %581
        %v584 = vadd.f32 %v574, %v582
        %v585 = vtanh.pop %v584
        %587 = vrot.lane.b32.xlu0 %v585, 64
        %v588 = vpop.permute.xlu0 %587
        %v590 = vmul.f32 %v572, %v588
        %v591 = vstv %s519
        %vm592 = vcmp.gt.s32.totalorder %v322, %v591
        %v593 = vsel %vm592, 1, 0
        %594 = vset.pattern.permute.xlu0 0
        %595 = vperm.xlu0 %594, %v593
        %v596 = vpop.permute.xlu0 %595
        %vm597 = vcmp.eq.s32.totalorder %v596, 1
        %v598 = vsel %vm597, %v590, %v508
        %v599 = vsel %vm597, %v584, %v509
        %v600 = vsel %vm597, %v590, 0.0
        %602 = vrot.lane.b32.xlu0 %v600, 32
        %v603 = vpop.permute.xlu0 %602
        %s605 = scalar_lea.vmem %s303, %s520 [#allocation9]
        %606 = vst.msk [vmem:[%s605] sm:$0xff] %vm343, %v603
        %s607 = smul.u32 %s325, 3
        %s608 = sadd.s32 %s330, %s607
        %s609 = sadd.s32 %s327, %s608
        %s610 = smul.u32 %s608, 8
        %s611 = scalar_lea.vmem %s260, %s610 [#allocation4]
        %v612 = vld [vmem:[%s611] sm:$0xff]
        %v613 = vadd.f32 %v612, %v336
        %v614 = vld [vmem:[%s270] sm:$0xff]
        %v615 = vld [vmem:[%s270 + $0x8] sm:$0xff]
        %v616 = vld [vmem:[%s270 + $0x10] sm:$0xff]
        %v617 = vld [vmem:[%s270 + $0x18] sm:$0xff]
        %619 = vrot.lane.b32.xlu0 %v598, 32
        %v620 = vpop.permute.xlu0 %619
        %v621 = vsel %vm343, %v620, 0
        %623 = vmatpush.msra.mxu0 0.0
        %624 = vmatpush.msra.mxu0 0.0
        %625 = vmatpush.msra.mxu0 0.0
        %626 = vmatpush.msra.mxu0 0.0
        %627 = vmatpush.msra.mxu0 0.0
        %628 = vmatpush.msra.mxu0 0.0
        %629 = vmatpush.msra.mxu0 0.0
        %630 = vmatpush.msra.mxu0 0.0
        %631 = vmatpush.msra.mxu0 0.0
        %632 = vmatpush.msra.mxu0 0.0
        %633 = vmatpush.msra.mxu0 0.0
        %634 = vmatpush.msra.mxu0 0.0
        %635 = vmatpush.msra.mxu0 %v617
        %636 = vmatpush.msra.mxu0 %v616
        %637 = vmatpush.msra.mxu0 %v615
        %638 = vmatpush.msra.mxu0 %v614
        %639 = vmatmul.f32.gmra.mxu0 %v621
        %v640 = vpop.f32.mrf.mxu0
        %v641 = vadd.f32 0.0, %v640
        %642 = vdwg.mxu0
        %v643 = vadd.f32 %v613, %v641
        %v644 = vxor.u32 %v643, 2147483648
        %v645 = vmul.f32 %v644, 1.442695
        %v646 = vpow.pop %v645
        %v647 = vadd.f32 %v646, 1.0
        %v648 = vrcp.pop %v647
        %v649 = vmul.f32 %v647, %v648
        %v650 = vsub.f32 1.0, %v649
        %v651 = vmul.f32 %v648, %v650
        %v652 = vadd.f32 %v648, %v651
        %vm653 = vweird.f32 %v647
        %vm654 = vweird.f32 %v648
        %vm655 = vmor %vm653, %vm654
        %v656 = vsel %vm655, %v648, %v652
        %v657 = vand.u32 2147483647, %v647
        %vm658 = vcmp.eq.f32.partialorder %v657, 8.507059e+37
        %v659 = vand.u32 %v647, 2147483648
        %v660 = vor.u32 1.1754944e-38, %v659
        %v661 = vsel %vm658, %v660, %v656
        %v662 = vmul.f32 1.0, %v661
        %v663 = vtanh.pop %v643
        %v664 = vmul.f32 %v662, %v599
        %666 = vrot.lane.b32.xlu0 %v663, 64
        %v667 = vpop.permute.xlu0 %666
        %v669 = vmul.f32 %v662, %v667
        %671 = vrot.lane.b32.xlu0 %v669, 32
        %v672 = vpop.permute.xlu0 %671
        %v674 = vadd.f32 %v664, %v672
        %v675 = vtanh.pop %v674
        %677 = vrot.lane.b32.xlu0 %v675, 64
        %v678 = vpop.permute.xlu0 %677
        %v680 = vmul.f32 %v662, %v678
        %v681 = vstv %s609
        %vm682 = vcmp.gt.s32.totalorder %v322, %v681
        %v683 = vsel %vm682, 1, 0
        %684 = vset.pattern.permute.xlu0 0
        %685 = vperm.xlu0 %684, %v683
        %v686 = vpop.permute.xlu0 %685
        %vm687 = vcmp.eq.s32.totalorder %v686, 1
        %v688 = vsel %vm687, %v680, %v598
        %v689 = vsel %vm687, %v674, %v599
        %v690 = vsel %vm687, %v680, 0.0
        %692 = vrot.lane.b32.xlu0 %v690, 32
        %v693 = vpop.permute.xlu0 %692
        %s695 = scalar_lea.vmem %s303, %s610 [#allocation9]
        %696 = vst.msk [vmem:[%s695] sm:$0xff] %vm343, %v693
        %s697 = smul.u32 %s325, 4
        %s698 = sadd.s32 %s330, %s697
        %s699 = sadd.s32 %s327, %s698
        %s700 = smul.u32 %s698, 8
        %s701 = scalar_lea.vmem %s260, %s700 [#allocation4]
        %v702 = vld [vmem:[%s701] sm:$0xff]
        %v703 = vadd.f32 %v702, %v336
        %v704 = vld [vmem:[%s270] sm:$0xff]
        %v705 = vld [vmem:[%s270 + $0x8] sm:$0xff]
        %v706 = vld [vmem:[%s270 + $0x10] sm:$0xff]
        %v707 = vld [vmem:[%s270 + $0x18] sm:$0xff]
        %709 = vrot.lane.b32.xlu0 %v688, 32
        %v710 = vpop.permute.xlu0 %709
        %v711 = vsel %vm343, %v710, 0
        %713 = vmatpush.msra.mxu0 0.0
        %714 = vmatpush.msra.mxu0 0.0
        %715 = vmatpush.msra.mxu0 0.0
        %716 = vmatpush.msra.mxu0 0.0
        %717 = vmatpush.msra.mxu0 0.0
        %718 = vmatpush.msra.mxu0 0.0
        %719 = vmatpush.msra.mxu0 0.0
        %720 = vmatpush.msra.mxu0 0.0
        %721 = vmatpush.msra.mxu0 0.0
        %722 = vmatpush.msra.mxu0 0.0
        %723 = vmatpush.msra.mxu0 0.0
        %724 = vmatpush.msra.mxu0 0.0
        %725 = vmatpush.msra.mxu0 %v707
        %726 = vmatpush.msra.mxu0 %v706
        %727 = vmatpush.msra.mxu0 %v705
        %728 = vmatpush.msra.mxu0 %v704
        %729 = vmatmul.f32.gmra.mxu0 %v711
        %v730 = vpop.f32.mrf.mxu0
        %v731 = vadd.f32 0.0, %v730
        %732 = vdwg.mxu0
        %v733 = vadd.f32 %v703, %v731
        %v734 = vxor.u32 %v733, 2147483648
        %v735 = vmul.f32 %v734, 1.442695
        %v736 = vpow.pop %v735
        %v737 = vadd.f32 %v736, 1.0
        %v738 = vrcp.pop %v737
        %v739 = vmul.f32 %v737, %v738
        %v740 = vsub.f32 1.0, %v739
        %v741 = vmul.f32 %v738, %v740
        %v742 = vadd.f32 %v738, %v741
        %vm743 = vweird.f32 %v737
        %vm744 = vweird.f32 %v738
        %vm745 = vmor %vm743, %vm744
        %v746 = vsel %vm745, %v738, %v742
        %v747 = vand.u32 2147483647, %v737
        %vm748 = vcmp.eq.f32.partialorder %v747, 8.507059e+37
        %v749 = vand.u32 %v737, 2147483648
        %v750 = vor.u32 1.1754944e-38, %v749
        %v751 = vsel %vm748, %v750, %v746
        %v752 = vmul.f32 1.0, %v751
        %v753 = vtanh.pop %v733
        %v754 = vmul.f32 %v752, %v689
        %756 = vrot.lane.b32.xlu0 %v753, 64
        %v757 = vpop.permute.xlu0 %756
        %v759 = vmul.f32 %v752, %v757
        %761 = vrot.lane.b32.xlu0 %v759, 32
        %v762 = vpop.permute.xlu0 %761
        %v764 = vadd.f32 %v754, %v762
        %v765 = vtanh.pop %v764
        %767 = vrot.lane.b32.xlu0 %v765, 64
        %v768 = vpop.permute.xlu0 %767
        %v770 = vmul.f32 %v752, %v768
        %v771 = vstv %s699
        %vm772 = vcmp.gt.s32.totalorder %v322, %v771
        %v773 = vsel %vm772, 1, 0
        %774 = vset.pattern.permute.xlu0 0
        %775 = vperm.xlu0 %774, %v773
        %v776 = vpop.permute.xlu0 %775
        %vm777 = vcmp.eq.s32.totalorder %v776, 1
        %v778 = vsel %vm777, %v770, %v688
        %v779 = vsel %vm777, %v764, %v689
        %v780 = vsel %vm777, %v770, 0.0
        %782 = vrot.lane.b32.xlu0 %v780, 32
        %v783 = vpop.permute.xlu0 %782
        %s785 = scalar_lea.vmem %s303, %s700 [#allocation9]
        %786 = vst.msk [vmem:[%s785] sm:$0xff] %vm343, %v783
        %s787 = smul.u32 %s325, 5
        %s788 = sadd.s32 %s330, %s787
        %s789 = sadd.s32 %s327, %s788
        %s790 = smul.u32 %s788, 8
        %s791 = scalar_lea.vmem %s260, %s790 [#allocation4]
        %v792 = vld [vmem:[%s791] sm:$0xff]
        %v793 = vadd.f32 %v792, %v336
        %v794 = vld [vmem:[%s270] sm:$0xff]
        %v795 = vld [vmem:[%s270 + $0x8] sm:$0xff]
        %v796 = vld [vmem:[%s270 + $0x10] sm:$0xff]
        %v797 = vld [vmem:[%s270 + $0x18] sm:$0xff]
        %799 = vrot.lane.b32.xlu0 %v778, 32
        %v800 = vpop.permute.xlu0 %799
        %v801 = vsel %vm343, %v800, 0
        %803 = vmatpush.msra.mxu0 0.0
        %804 = vmatpush.msra.mxu0 0.0
        %805 = vmatpush.msra.mxu0 0.0
        %806 = vmatpush.msra.mxu0 0.0
        %807 = vmatpush.msra.mxu0 0.0
        %808 = vmatpush.msra.mxu0 0.0
        %809 = vmatpush.msra.mxu0 0.0
        %810 = vmatpush.msra.mxu0 0.0
        %811 = vmatpush.msra.mxu0 0.0
        %812 = vmatpush.msra.mxu0 0.0
        %813 = vmatpush.msra.mxu0 0.0
        %814 = vmatpush.msra.mxu0 0.0
        %815 = vmatpush.msra.mxu0 %v797
        %816 = vmatpush.msra.mxu0 %v796
        %817 = vmatpush.msra.mxu0 %v795
        %818 = vmatpush.msra.mxu0 %v794
        %819 = vmatmul.f32.gmra.mxu0 %v801
        %v820 = vpop.f32.mrf.mxu0
        %v821 = vadd.f32 0.0, %v820
        %822 = vdwg.mxu0
        %v823 = vadd.f32 %v793, %v821
        %v824 = vxor.u32 %v823, 2147483648
        %v825 = vmul.f32 %v824, 1.442695
        %v826 = vpow.pop %v825
        %v827 = vadd.f32 %v826, 1.0
        %v828 = vrcp.pop %v827
        %v829 = vmul.f32 %v827, %v828
        %v830 = vsub.f32 1.0, %v829
        %v831 = vmul.f32 %v828, %v830
        %v832 = vadd.f32 %v828, %v831
        %vm833 = vweird.f32 %v827
        %vm834 = vweird.f32 %v828
        %vm835 = vmor %vm833, %vm834
        %v836 = vsel %vm835, %v828, %v832
        %v837 = vand.u32 2147483647, %v827
        %vm838 = vcmp.eq.f32.partialorder %v837, 8.507059e+37
        %v839 = vand.u32 %v827, 2147483648
        %v840 = vor.u32 1.1754944e-38, %v839
        %v841 = vsel %vm838, %v840, %v836
        %v842 = vmul.f32 1.0, %v841
        %v843 = vtanh.pop %v823
        %v844 = vmul.f32 %v842, %v779
        %846 = vrot.lane.b32.xlu0 %v843, 64
        %v847 = vpop.permute.xlu0 %846
        %v849 = vmul.f32 %v842, %v847
        %851 = vrot.lane.b32.xlu0 %v849, 32
        %v852 = vpop.permute.xlu0 %851
        %v854 = vadd.f32 %v844, %v852
        %v855 = vtanh.pop %v854
        %857 = vrot.lane.b32.xlu0 %v855, 64
        %v858 = vpop.permute.xlu0 %857
        %v860 = vmul.f32 %v842, %v858
        %v861 = vstv %s789
        %vm862 = vcmp.gt.s32.totalorder %v322, %v861
        %v863 = vsel %vm862, 1, 0
        %864 = vset.pattern.permute.xlu0 0
        %865 = vperm.xlu0 %864, %v863
        %v866 = vpop.permute.xlu0 %865
        %vm867 = vcmp.eq.s32.totalorder %v866, 1
        %v868 = vsel %vm867, %v860, %v778
        %v869 = vsel %vm867, %v854, %v779
        %v870 = vsel %vm867, %v860, 0.0
        %872 = vrot.lane.b32.xlu0 %v870, 32
        %v873 = vpop.permute.xlu0 %872
        %s875 = scalar_lea.vmem %s303, %s790 [#allocation9]
        %876 = vst.msk [vmem:[%s875] sm:$0xff] %vm343, %v873
        %s877 = smul.u32 %s325, 6
        %s878 = sadd.s32 %s330, %s877
        %s879 = sadd.s32 %s327, %s878
        %s880 = smul.u32 %s878, 8
        %s881 = scalar_lea.vmem %s260, %s880 [#allocation4]
        %v882 = vld [vmem:[%s881] sm:$0xff]
        %v883 = vadd.f32 %v882, %v336
        %v884 = vld [vmem:[%s270] sm:$0xff]
        %v885 = vld [vmem:[%s270 + $0x8] sm:$0xff]
        %v886 = vld [vmem:[%s270 + $0x10] sm:$0xff]
        %v887 = vld [vmem:[%s270 + $0x18] sm:$0xff]
        %889 = vrot.lane.b32.xlu0 %v868, 32
        %v890 = vpop.permute.xlu0 %889
        %v891 = vsel %vm343, %v890, 0
        %893 = vmatpush.msra.mxu0 0.0
        %894 = vmatpush.msra.mxu0 0.0
        %895 = vmatpush.msra.mxu0 0.0
        %896 = vmatpush.msra.mxu0 0.0
        %897 = vmatpush.msra.mxu0 0.0
        %898 = vmatpush.msra.mxu0 0.0
        %899 = vmatpush.msra.mxu0 0.0
        %900 = vmatpush.msra.mxu0 0.0
        %901 = vmatpush.msra.mxu0 0.0
        %902 = vmatpush.msra.mxu0 0.0
        %903 = vmatpush.msra.mxu0 0.0
        %904 = vmatpush.msra.mxu0 0.0
        %905 = vmatpush.msra.mxu0 %v887
        %906 = vmatpush.msra.mxu0 %v886
        %907 = vmatpush.msra.mxu0 %v885
        %908 = vmatpush.msra.mxu0 %v884
        %909 = vmatmul.f32.gmra.mxu0 %v891
        %v910 = vpop.f32.mrf.mxu0
        %v911 = vadd.f32 0.0, %v910
        %912 = vdwg.mxu0
        %v913 = vadd.f32 %v883, %v911
        %v914 = vxor.u32 %v913, 2147483648
        %v915 = vmul.f32 %v914, 1.442695
        %v916 = vpow.pop %v915
        %v917 = vadd.f32 %v916, 1.0
        %v918 = vrcp.pop %v917
        %v919 = vmul.f32 %v917, %v918
        %v920 = vsub.f32 1.0, %v919
        %v921 = vmul.f32 %v918, %v920
        %v922 = vadd.f32 %v918, %v921
        %vm923 = vweird.f32 %v917
        %vm924 = vweird.f32 %v918
        %vm925 = vmor %vm923, %vm924
        %v926 = vsel %vm925, %v918, %v922
        %v927 = vand.u32 2147483647, %v917
        %vm928 = vcmp.eq.f32.partialorder %v927, 8.507059e+37
        %v929 = vand.u32 %v917, 2147483648
        %v930 = vor.u32 1.1754944e-38, %v929
        %v931 = vsel %vm928, %v930, %v926
        %v932 = vmul.f32 1.0, %v931
        %v933 = vtanh.pop %v913
        %v934 = vmul.f32 %v932, %v869
        %936 = vrot.lane.b32.xlu0 %v933, 64
        %v937 = vpop.permute.xlu0 %936
        %v939 = vmul.f32 %v932, %v937
        %941 = vrot.lane.b32.xlu0 %v939, 32
        %v942 = vpop.permute.xlu0 %941
        %v944 = vadd.f32 %v934, %v942
        %v945 = vtanh.pop %v944
        %947 = vrot.lane.b32.xlu0 %v945, 64
        %v948 = vpop.permute.xlu0 %947
        %v950 = vmul.f32 %v932, %v948
        %v951 = vstv %s879
        %vm952 = vcmp.gt.s32.totalorder %v322, %v951
        %v953 = vsel %vm952, 1, 0
        %954 = vset.pattern.permute.xlu0 0
        %955 = vperm.xlu0 %954, %v953
        %v956 = vpop.permute.xlu0 %955
        %vm957 = vcmp.eq.s32.totalorder %v956, 1
        %v958 = vsel %vm957, %v950, %v868
        %v959 = vsel %vm957, %v944, %v869
        %v960 = vsel %vm957, %v950, 0.0
        %962 = vrot.lane.b32.xlu0 %v960, 32
        %v963 = vpop.permute.xlu0 %962
        %s965 = scalar_lea.vmem %s303, %s880 [#allocation9]
        %966 = vst.msk [vmem:[%s965] sm:$0xff] %vm343, %v963
        %s967 = smul.u32 %s325, 7
        %s968 = sadd.s32 %s330, %s967
        %s969 = sadd.s32 %s327, %s968
        %s970 = smul.u32 %s968, 8
        %s971 = scalar_lea.vmem %s260, %s970 [#allocation4]
        %v972 = vld [vmem:[%s971] sm:$0xff]
        %v973 = vadd.f32 %v972, %v336
        %v974 = vld [vmem:[%s270] sm:$0xff]
        %v975 = vld [vmem:[%s270 + $0x8] sm:$0xff]
        %v976 = vld [vmem:[%s270 + $0x10] sm:$0xff]
        %v977 = vld [vmem:[%s270 + $0x18] sm:$0xff]
        %979 = vrot.lane.b32.xlu0 %v958, 32
        %v980 = vpop.permute.xlu0 %979
        %v981 = vsel %vm343, %v980, 0
        %983 = vmatpush.msra.mxu0 0.0
        %984 = vmatpush.msra.mxu0 0.0
        %985 = vmatpush.msra.mxu0 0.0
        %986 = vmatpush.msra.mxu0 0.0
        %987 = vmatpush.msra.mxu0 0.0
        %988 = vmatpush.msra.mxu0 0.0
        %989 = vmatpush.msra.mxu0 0.0
        %990 = vmatpush.msra.mxu0 0.0
        %991 = vmatpush.msra.mxu0 0.0
        %992 = vmatpush.msra.mxu0 0.0
        %993 = vmatpush.msra.mxu0 0.0
        %994 = vmatpush.msra.mxu0 0.0
        %995 = vmatpush.msra.mxu0 %v977
        %996 = vmatpush.msra.mxu0 %v976
        %997 = vmatpush.msra.mxu0 %v975
        %998 = vmatpush.msra.mxu0 %v974
        %999 = vmatmul.f32.gmra.mxu0 %v981
        %v1000 = vpop.f32.mrf.mxu0
        %v1001 = vadd.f32 0.0, %v1000
        %1002 = vdwg.mxu0
        %v1003 = vadd.f32 %v973, %v1001
        %v1004 = vxor.u32 %v1003, 2147483648
        %v1005 = vmul.f32 %v1004, 1.442695
        %v1006 = vpow.pop %v1005
        %v1007 = vadd.f32 %v1006, 1.0
        %v1008 = vrcp.pop %v1007
        %v1009 = vmul.f32 %v1007, %v1008
        %v1010 = vsub.f32 1.0, %v1009
        %v1011 = vmul.f32 %v1008, %v1010
        %v1012 = vadd.f32 %v1008, %v1011
        %vm1013 = vweird.f32 %v1007
        %vm1014 = vweird.f32 %v1008
        %vm1015 = vmor %vm1013, %vm1014
        %v1016 = vsel %vm1015, %v1008, %v1012
        %v1017 = vand.u32 2147483647, %v1007
        %vm1018 = vcmp.eq.f32.partialorder %v1017, 8.507059e+37
        %v1019 = vand.u32 %v1007, 2147483648
        %v1020 = vor.u32 1.1754944e-38, %v1019
        %v1021 = vsel %vm1018, %v1020, %v1016
        %v1022 = vmul.f32 1.0, %v1021
        %v1023 = vtanh.pop %v1003
        %v1024 = vmul.f32 %v1022, %v959
        %1026 = vrot.lane.b32.xlu0 %v1023, 64
        %v1027 = vpop.permute.xlu0 %1026
        %v1029 = vmul.f32 %v1022, %v1027
        %1031 = vrot.lane.b32.xlu0 %v1029, 32
        %v1032 = vpop.permute.xlu0 %1031
        %v1034 = vadd.f32 %v1024, %v1032
        %v1035 = vtanh.pop %v1034
        %1037 = vrot.lane.b32.xlu0 %v1035, 64
        %v1038 = vpop.permute.xlu0 %1037
        %v1040 = vmul.f32 %v1022, %v1038
        %v1041 = vstv %s969
        %vm1042 = vcmp.gt.s32.totalorder %v322, %v1041
        %v1043 = vsel %vm1042, 1, 0
        %1044 = vset.pattern.permute.xlu0 0
        %1045 = vperm.xlu0 %1044, %v1043
        %v1046 = vpop.permute.xlu0 %1045
        %vm1047 = vcmp.eq.s32.totalorder %v1046, 1
        %v1048 = vsel %vm1047, %v1040, %v958
        %v1049 = vsel %vm1047, %v1034, %v959
        %v1050 = vsel %vm1047, %v1040, 0.0
        %1052 = vrot.lane.b32.xlu0 %v1050, 32
        %v1053 = vpop.permute.xlu0 %1052
        %s1055 = scalar_lea.vmem %s303, %s970 [#allocation9]
        %1056 = vst.msk [vmem:[%s1055] sm:$0xff] %vm343, %v1053
        %1058 = vrot.lane.b32.xlu0 %v1048, 32
        %v1059 = vpop.permute.xlu0 %1058
        %1061 = vst.msk [vmem:[#allocation2] sm:$0xff] %vm343, %v1059
        %1063 = vrot.lane.b32.xlu0 %v1049, 96
        %v1064 = vpop.permute.xlu0 %1063
        %1066 = vst.msk [vmem:[#allocation3] sm:$0xff] %vm343, %v1064
        %s1067 = sand.u32 %s159, 1
        %s1068 = scalar_lea.sflag [#allocation6], %s1067
        %s1069 = sand.u32 %s159, 1
        %s1070 = smul.addr %s1069, 64
        %s1071 = scalar_lea.vmem [#allocation9], %s1070
        // Predicated region
        $region49: #{tpu_custom_call.1} parent=35 // pred_check
          %p1072 = pneg %p169
        $region50: #{tpu_custom_call.1} parent=35 // pred_check_branch
          %1074 = sbr.rel (%p1072) target = $region52
        $region51: #{tpu_custom_call.1} parent=35 // pred_region
          %s1075 = smul.u32 %s28, 2
          %s1076 = ssub.s32 1, %s1075
          %s1077 = smul.u32 %s1076, %s29
          %s1078 = smul.u32 8, %s1077
          %1080 = vsyncadd %s1068, 0
          %s1081 = smul.addr %s28, 8
          %s1082 = sadd.s32 %s1078, %s1081
          %s1083 = smul.addr %s1082, 8
          %s1084 = scalar_lea.hbm %s4, %s1083
          %s1085 = sshll.u32 %s1071, 4
          %s1086 = int_to_ptr.vmem [resolvable:$true] %s1085
          %s1087 = sshll.u32 %s1084, 4
          %s1088 = int_to_ptr.hbm [resolvable:$true] %s1087
          %1093 = dma.vmem_to_hbm [thread:$0]  %s1086, 1024, %s1088, %s1068, 128, 128, 8
        $region52: #{tpu_custom_call.1} parent=35 // pred_fallthru
          _
      $region36: #{tpu_custom_call.1} parent=5 // pred_fallthru
        _
      %p1094 = scmp.le.s32.totalorder 2, %s19
      // Predicated region
      $region53: #{tpu_custom_call.1} parent=5 // pred_check
        %p1095 = pneg %p1094
      $region54: #{tpu_custom_call.1} parent=5 // pred_check_branch
        %1097 = sbr.rel (%p1095) target = $region56
      $region55: #{tpu_custom_call.1} parent=5 // pred_region
        %s1098 = ssub.s32 %s19, 2
        // Predicated region
        $region57: #{tpu_custom_call.1} parent=55 // pred_check
          %p1099 = pneg %p175
        $region58: #{tpu_custom_call.1} parent=55 // pred_check_branch
          %1101 = sbr.rel (%p1099) target = $region60
        $region59: #{tpu_custom_call.1} parent=55 // pred_region
          %s1102 = sand.u32 %s160, 1
          %s1103 = scalar_lea.sflag [#allocation6], %s1102
          %s1104 = sand.u32 %s160, 1
          %s1105 = smul.addr %s1104, 64
          %s1106 = scalar_lea.vmem [#allocation9], %s1105
          %1108 = dma.done %s1103, 1024
        $region60: #{tpu_custom_call.1} parent=55 // pred_fallthru
          _
      $region56: #{tpu_custom_call.1} parent=5 // pred_fallthru
        _
    $region6: #{tpu_custom_call.1} parent=1 // loop_footer
      %s23 = sadd.s32 1, %s19
    $region7: #{tpu_custom_call.1} parent=1 // loop_footer_branch
      %18 = sbr.rel target = $region3
    $region8: #{tpu_custom_call.1} parent=1 // loop_exit
      _
    %1109 = vsyncpa [#allocation5], 1
    %s1110 = scalar_lea.sflag [#allocation5], 1
    %1111 = vsyncpa %s1110, 1
    %1112 = vsyncpa [#allocation8], 1
    %s1113 = scalar_lea.sflag [#allocation8], 1
    %1114 = vsyncpa %s1113, 1
    %1115 = vsyncpa [#allocation6], 1
    %s1116 = scalar_lea.sflag [#allocation6], 1
    %1117 = vsyncpa %s1116, 1

</llo_original>
